<compile_context>
chip_gen: v7x
topology: tpu7x:2x2x1
jax: 0.10.0
libtpu: 0.0.40
codegen_flags: <defaults>
</compile_context>

<pallas_src>
import functools

import jax
import jax.numpy as jnp
from jax import lax
from jax.experimental import pallas as pl
from jax.experimental.pallas import tpu as pltpu

LIT_DIM = 32
CLAUSE_DIM = 32
N_HOPS = 2
LN_EPS = 1e-5

# column layout of the M2 accumulator: [G^T C_hi (32) | deg (1) | zeros | G^T C_lo (32)]
_M_HI = 0
_M_DEG = CLAUSE_DIM
_M_LO = 2 * CLAUSE_DIM
_M_W = 3 * CLAUSE_DIM


def _round_up(x, m):
    return (x + m - 1) // m * m


def gnn1_drat_kernel(
    g_ref,                       # (TILE_C, n_lits) int8 block of G (0/1)
    w_ref,                       # (R, 64) f32 packed weights/biases
    out_ref,                     # (1, n_vars) f32
    # scratch (persist across grid steps)
    L_sc,                        # (n_lits, 32)  f32   literal embeddings
    P_sc,                        # (n_lits, 128) bf16  fused operand, split hi|lo
    M2_sc,                       # (n_lits, 96)  f32   [G^T C_hi | deg | pad | G^T C_lo]
    mean_sc,                     # (1, 32) f32   running mean of C (Welford)
    m2_sc,                       # (1, 32) f32   running M2 of C (Welford)
    *,
    offs, n_clauses, n_pad, tile_c, n_lits,
):
    hop = pl.program_id(0)
    t = pl.program_id(1)
    n_tiles = pl.num_programs(1)
    last_hop = pl.num_programs(0) - 1
    half = n_lits // 2

    def W(name):
        o, r, c = offs[name]
        return w_ref[o:o + r, :c]

    # ---- one-time init of the literal embeddings ------------------------------------
    @pl.when(jnp.logical_and(hop == 0, t == 0))
    def _init_L():
        L_sc[...] = jnp.broadcast_to(W('L_init'), (n_lits, LIT_DIM))

    # ---- per-hop start: build fused operand P (split bf16), zero accumulators --------
    @pl.when(t == 0)
    def _start_hop():
        L = L_sc[...]
        L_flip = pltpu.roll(L, half, 0)          # == cat([L[half:], L[:half]], axis=0)
        cw1 = W('cw1')
        P = (jnp.dot(L, cw1[:LIT_DIM], preferred_element_type=jnp.float32)
             + jnp.dot(L_flip, cw1[LIT_DIM:], preferred_element_type=jnp.float32))
        P_hi = P.astype(jnp.bfloat16)
        P_lo = (P - P_hi.astype(jnp.float32)).astype(jnp.bfloat16)
        P_sc[...] = jnp.concatenate([P_hi, P_lo], axis=1)
        M2_sc[...] = jnp.zeros_like(M2_sc)
        mean_sc[...] = jnp.zeros_like(mean_sc)
        m2_sc[...] = jnp.zeros_like(m2_sc)

    # ---- per-clause-tile work: single streaming pass over G --------------------------
    G = g_ref[...].astype(jnp.bfloat16)                               # int8 -> bf16, exact
    cm2 = jnp.dot(G, P_sc[...], preferred_element_type=jnp.float32)   # (tile_c, 128)
    cm = cm2[:, :2 * LIT_DIM] + cm2[:, 2 * LIT_DIM:]                  # recombine hi+lo
    h = jnp.maximum(cm + W('cb1'), 0.0)
    # augmented second layer: cols 0..31 = C, col 32 = 1 (degree), cols 33..63 = 0
    C_aug = jnp.dot(h, W('cw2a'), preferred_element_type=jnp.float32) + W('cb2a')
    C = C_aug[:, :CLAUSE_DIM]

    # running clause statistics: per-tile Chan/Welford combine (f32, no cancellation).
    # Padded rows (zero G rows -> constant C) are included here and removed at hop end.
    t_mean = jnp.sum(C, axis=0, keepdims=True) * (1.0 / tile_c)
    d = C - t_mean
    t_m2 = jnp.sum(d * d, axis=0, keepdims=True)
    n_prev = (t * tile_c).astype(jnp.float32)
    inv_n_new = 1.0 / (n_prev + tile_c)
    delta = t_mean - mean_sc[...]
    mean_sc[...] = mean_sc[...] + delta * (tile_c * inv_n_new)
    m2_sc[...] = m2_sc[...] + t_m2 + (delta * delta) * (n_prev * tile_c * inv_n_new)

    # split-bf16 accumulation of M = G^T @ [C | 1]   (hi + lo keeps ~f32 accuracy)
    hi = C_aug.astype(jnp.bfloat16)                                   # [C_hi | 1 | 0]
    lo = (C - hi[:, :CLAUSE_DIM].astype(jnp.float32)).astype(jnp.bfloat16)
    C_cat = jnp.concatenate([hi, lo], axis=1)                         # (tile_c, 96) bf16
    M2_sc[...] += lax.dot_general(
        G, C_cat,
        dimension_numbers=(((0,), (0,)), ((), ())),
        preferred_element_type=jnp.float32)

    # ---- per-hop finalize: normalization pushed through G^T, L update, layernorm -----
    @pl.when(t == n_tiles - 1)
    def _end_hop():
        mean_t = mean_sc[...]
        m2 = m2_sc[...]
        if n_pad:
            # padded clause rows have the constant value relu(cb1) @ cw2 + cb2;
            # remove their (exact) contribution from the running stats.
            c_pad = (jnp.dot(jnp.maximum(W('cb1'), 0.0), W('cw2a'),
                             preferred_element_type=jnp.float32)
                     + W('cb2a'))[:, :CLAUSE_DIM]
            k = float(n_pad)
            mean_r = mean_t + (k / n_clauses) * (mean_t - c_pad)
            m2 = m2 - k * (c_pad - mean_t) * (c_pad - mean_r)
        else:
            mean_r = mean_t
        mu = mean_r                                                   # (1, 32)
        inv_nm1 = 1.0 / max(n_clauses - 1, 1)                         # torch std: ddof=1
        var = jnp.maximum(m2 * inv_nm1, 0.0)
        scale = 1.0 / (jnp.sqrt(var) + 1e-10)

        M = M2_sc[:, _M_HI:_M_HI + CLAUSE_DIM] + M2_sc[:, _M_LO:_M_LO + CLAUSE_DIM]
        deg = M2_sc[:, _M_DEG:_M_DEG + 1]                             # (n_lits, 1)
        L_msg = (M - deg * mu) * scale                                # == G^T @ C_norm

        h1 = jnp.maximum(
            jnp.dot(L_msg, W('lw1'), preferred_element_type=jnp.float32) + W('lb1'),
            0.0)
        L_new = (jnp.dot(h1, W('lw2'), preferred_element_type=jnp.float32)
                 + W('lb2') + 0.1 * L_sc[...])

        m = jnp.mean(L_new, axis=1, keepdims=True)
        xc = L_new - m
        v = jnp.mean(xc * xc, axis=1, keepdims=True)
        L_sc[...] = xc * lax.rsqrt(v + LN_EPS) * W('ln_g') + W('ln_b')

    # ---- final score (last hop, last tile); lane-dense (1, n_vars) output ------------
    @pl.when(jnp.logical_and(hop == last_hop, t == n_tiles - 1))
    def _score():
        L = L_sc[...]
        vw1 = W('vw1')
        hs = jnp.maximum(
            jnp.dot(L[:half], vw1[:LIT_DIM], preferred_element_type=jnp.float32)
            + jnp.dot(L[half:], vw1[LIT_DIM:], preferred_element_type=jnp.float32)
            + W('vb1'),
            0.0)                                                      # (n_vars, 64)
        out_ref[...] = lax.dot_general(
            W('vw2'), hs,
            dimension_numbers=(((1,), (1,)), ((), ())),
            preferred_element_type=jnp.float32) + W('vb2')


def _pack_weights(entries):
    """Pack small 2-D f32 tensors into one (R, 64) slab (rows padded to multiples of 8)."""
    pieces, offs, cur = [], {}, 0
    for name, a in entries:
        a = jnp.asarray(a, jnp.float32)
        r, c = a.shape
        rp = _round_up(r, 8)
        buf = jnp.zeros((rp, 64), jnp.float32).at[:r, :c].set(a)
        offs[name] = (cur, r, c)
        pieces.append(buf)
        cur += rp
    return jnp.concatenate(pieces, axis=0), offs


def _vmem_budget_bytes():
    try:
        return int(pltpu.get_tpu_info().vmem_capacity_bytes)
    except Exception:
        return 64 << 20          # conservative fallback (v7x-sized)


def gnn1_drat_forward(G, params, *, tile_c=None):
    n_clauses, n_lits = G.shape
    assert n_lits % 16 == 0, "pad the literal dimension (zero G columns) to a multiple of 16"
    assert n_clauses >= 2
    n_vars = n_lits // 2

    # literal-sized VMEM scratch: L (f32,32) + P (bf16,128) + M2 (f32,96) per literal.
    scratch_bytes = n_lits * (LIT_DIM * 4 + 4 * LIT_DIM * 2 + _M_W * 4)

    # clause tile from a VMEM byte budget (int8 G, double-buffered); never over-pad.
    max_tile = _round_up(n_clauses, 32)
    if tile_c is None:
        budget = int(_vmem_budget_bytes() * 0.75)
        avail = max(budget - scratch_bytes - (2 << 20), 2 << 20)
        tile_c = avail // (2 * n_lits)
    tile_c = max(32, min((int(tile_c) // 32) * 32, max_tile))
    n_clauses_p = _round_up(n_clauses, tile_c)
    n_tiles = n_clauses_p // tile_c
    n_pad = n_clauses_p - n_clauses

    # 0/1 incidence streamed as int8 (exact; halves HBM bytes vs bf16), zero row padding.
    # TODO(synk): on v7x an fp8 (e4m3) stream would also be exact for 0/1 and is equivalent.
    Gb = jnp.pad(jnp.asarray(G), ((0, n_pad), (0, 0))).astype(jnp.int8)

    # augmented second C-update layer: output col 32 is a constant 1 so the per-literal
    # degree accumulates for free inside the same G^T matmul; cols 33..63 are zero.
    cw2a = jnp.zeros((2 * LIT_DIM, 2 * CLAUSE_DIM), jnp.float32).at[:, :CLAUSE_DIM].set(params['cw2'])
    cb2a = jnp.zeros((1, 2 * CLAUSE_DIM), jnp.float32).at[:, :CLAUSE_DIM].set(params['cb2'])
    cb2a = cb2a.at[0, CLAUSE_DIM].set(1.0)

    packed, offs = _pack_weights([
        ('L_init', params['L_init']),
        ('cw1', params['cw1']), ('cb1', params['cb1']),
        ('cw2a', cw2a), ('cb2a', cb2a),
        ('lw1', params['lw1']), ('lb1', params['lb1']),
        ('lw2', params['lw2']), ('lb2', params['lb2']),
        ('ln_g', params['ln_g']), ('ln_b', params['ln_b']),
        ('vw1', params['vw1']), ('vb1', params['vb1']),
        ('vw2', params['vw2'].T), ('vb2', params['vb2']),
    ])

    kernel = functools.partial(
        gnn1_drat_kernel, offs=offs, n_clauses=n_clauses, n_pad=n_pad,
        tile_c=tile_c, n_lits=n_lits)

    # VMEM limit from the actual allocation (not a fixed constant).
    need = (scratch_bytes
            + 2 * tile_c * n_lits                     # double-buffered int8 G tile
            + 2 * packed.shape[0] * 64 * 4            # packed weight slab (constant index)
            + 2 * n_vars * 4
            + (4 << 20))                              # compiler / pipeline headroom
    vmem_limit = int(min(max(need, 16 << 20), 128 << 20))

    out_row = pl.pallas_call(
        kernel,
        out_shape=jax.ShapeDtypeStruct((1, n_vars), jnp.float32),
        grid_spec=pltpu.PrefetchScalarGridSpec(
            num_scalar_prefetch=0,
            grid=(N_HOPS, n_tiles),
            in_specs=[
                # G stream; when n_tiles == 1 the block index is constant across hops,
                # so the whole (padded) G is DMA'd from HBM exactly once.
                pl.BlockSpec((tile_c, n_lits), lambda h, t: (t, 0)),
                pl.BlockSpec((packed.shape[0], 64), lambda h, t: (0, 0)),
            ],
            out_specs=pl.BlockSpec((1, n_vars), lambda h, t: (0, 0)),
            scratch_shapes=[
                pltpu.VMEM((n_lits, LIT_DIM), jnp.float32),          # L
                pltpu.VMEM((n_lits, 4 * LIT_DIM), jnp.bfloat16),     # P (hi | lo)
                pltpu.VMEM((n_lits, _M_W), jnp.float32),             # M2 (+deg col)
                pltpu.VMEM((1, CLAUSE_DIM), jnp.float32),            # running mean(C)
                pltpu.VMEM((1, CLAUSE_DIM), jnp.float32),            # running M2(C)
            ]),
        compiler_params=pltpu.CompilerParams(
            dimension_semantics=("arbitrary", "arbitrary"),
            vmem_limit_bytes=vmem_limit),
    )(Gb, packed)

    return out_row.reshape(n_vars, 1)


def init_params(key):
    ks = jax.random.split(key, 16)

    def lin_w(k, din, dout):
        return (jax.random.normal(k, (din, dout), jnp.float32) / jnp.sqrt(din)).astype(jnp.float32)

    def lin_b(k, dout):
        return (jax.random.normal(k, (1, dout), jnp.float32) * 0.01).astype(jnp.float32)

    p = {}
    # nn.Parameter xavier_normal_ on [1, lit_dim]
    p['L_init'] = (jax.random.normal(ks[0], (1, LIT_DIM), jnp.float32)
                   * jnp.sqrt(2.0 / (1 + LIT_DIM))).astype(jnp.float32)
    # C_update: 2L -> 2L -> C
    p['cw1'] = lin_w(ks[1], 2 * LIT_DIM, 2 * LIT_DIM)
    p['cb1'] = lin_b(ks[2], 2 * LIT_DIM)
    p['cw2'] = lin_w(ks[3], 2 * LIT_DIM, CLAUSE_DIM)
    p['cb2'] = lin_b(ks[4], CLAUSE_DIM)
    # L_update: C -> C -> L
    p['lw1'] = lin_w(ks[5], CLAUSE_DIM, CLAUSE_DIM)
    p['lb1'] = lin_b(ks[6], CLAUSE_DIM)
    p['lw2'] = lin_w(ks[7], CLAUSE_DIM, LIT_DIM)
    p['lb2'] = lin_b(ks[8], LIT_DIM)
    # LayerNorm(lit_dim) defaults
    p['ln_g'] = jnp.ones((1, LIT_DIM), jnp.float32)
    p['ln_b'] = jnp.zeros((1, LIT_DIM), jnp.float32)
    # V_score_drat: 2L -> 2L -> 1
    p['vw1'] = lin_w(ks[9], 2 * LIT_DIM, 2 * LIT_DIM)
    p['vb1'] = lin_b(ks[10], 2 * LIT_DIM)
    p['vw2'] = lin_w(ks[11], 2 * LIT_DIM, 1)
    p['vb2'] = lin_b(ks[12], 1)
    return p


def gnn1_drat_ref(G, p):
    """Plain-JAX f32 reference mirroring the torch forward (eval mode)."""
    n_clauses, n_lits = G.shape
    half = n_lits // 2
    L = jnp.broadcast_to(p['L_init'], (n_lits, LIT_DIM))
    for _ in range(N_HOPS):
        L_flip = jnp.concatenate([L[half:], L[:half]], axis=0)
        C_pre = jnp.concatenate([L, L_flip], axis=1)
        C_msg = G @ C_pre
        h = jax.nn.relu(C_msg @ p['cw1'] + p['cb1'])
        C = h @ p['cw2'] + p['cb2']
        C = C - C.mean(axis=0)
        C = C / (C.std(axis=0, ddof=1) + 1e-10)
        L_msg = G.T @ C
        h = jax.nn.relu(L_msg @ p['lw1'] + p['lb1'])
        L = (h @ p['lw2'] + p['lb2']) + 0.1 * L
        m = L.mean(axis=1, keepdims=True)
        v = ((L - m) ** 2).mean(axis=1, keepdims=True)
        L = (L - m) * jax.lax.rsqrt(v + LN_EPS) * p['ln_g'] + p['ln_b']
    V = jnp.concatenate([L[:half], L[half:]], axis=1)
    h = jax.nn.relu(V @ p['vw1'] + p['vb1'])
    return h @ p['vw2'] + p['vb2']


if __name__ == "__main__":
    key = jax.random.PRNGKey(0)
    k_g1, k_g2, k_p = jax.random.split(key, 3)

    params = init_params(k_p)

    # n_lits = 32 (n_vars = 16); small deterministic incidence matrices.
    G1 = jax.random.bernoulli(k_g1, 0.3, (80, 32)).astype(jnp.float32)   # 80 clauses
    G2 = jax.random.bernoulli(k_g2, 0.25, (64, 32)).astype(jnp.float32)  # 64 clauses

    checks = [
        (G1, dict(tile_c=32)),   # 3 clause tiles, 16 padded rows (stats correction path)
        (G1, dict()),            # auto tile -> single resident tile (G read once, both hops)
        (G2, dict(tile_c=32)),   # 2 clause tiles, no padding
    ]
    for G, kw in checks:
        out = jax.block_until_ready(gnn1_drat_forward(G, params, **kw))
        ref = gnn1_drat_ref(G, params)
        assert out.shape == (G.shape[1] // 2, 1), out.shape
        assert bool(jnp.all(jnp.isfinite(out)))
        max_err = float(jnp.max(jnp.abs(out - ref)))
        assert max_err < 1e-2, f"mismatch vs reference: {max_err}"

    print("KERNEL_OK")
</pallas_src>

<mosaic_0001>
module attributes {stable_mosaic.version = 11 : i64} {
  func.func @gnn1_drat_kernel(%arg0: i32, %arg1: i32, %arg2: memref<32x32xi8, #tpu.memory_space<vmem>>, %arg3: memref<336x64xf32, #tpu.memory_space<vmem>>, %arg4: memref<1x16xf32, #tpu.memory_space<vmem>>, %arg5: memref<32x32xf32, #tpu.memory_space<vmem>>, %arg6: memref<32x128xbf16, #tpu.memory_space<vmem>>, %arg7: memref<32x96xf32, #tpu.memory_space<vmem>>, %arg8: memref<1x32xf32, #tpu.memory_space<vmem>>, %arg9: memref<1x32xf32, #tpu.memory_space<vmem>>) attributes {dimension_semantics = [#tpu.dimension_semantics<arbitrary>, #tpu.dimension_semantics<arbitrary>], iteration_bounds = array<i64: 2, 3>, scalar_prefetch = 0 : i64, scratch_operands = 5 : i64, tpu.core_type = #tpu.core_type<tc>, window_params = [{transform_indices = @transform_0, window_bounds = array<i64: 32, 32>}, {pipeline_mode = #tpu.pipeline_mode<synchronous>, transform_indices = @transform_1, window_bounds = array<i64: 336, 64>}, {pipeline_mode = #tpu.pipeline_mode<synchronous>, transform_indices = @transform_2, window_bounds = array<i64: 1, 16>}]} {
    %c0_i32 = arith.constant 0 : i32
    %0 = arith.cmpi eq, %arg0, %c0_i32 : i32
    %c0_i32_0 = arith.constant 0 : i32
    %1 = arith.cmpi eq, %arg1, %c0_i32_0 : i32
    %2 = arith.andi %0, %1 : i1
    %3 = arith.extui %2 : i1 to i32
    %c0_i32_1 = arith.constant 0 : i32
    %4 = arith.cmpi ne, %3, %c0_i32_1 : i32
    scf.if %4 {
      %c0_37 = arith.constant 0 : index
      %c0_38 = arith.constant 0 : index
      %74 = vector.load %arg3[%c0_37, %c0_38] : memref<336x64xf32, #tpu.memory_space<vmem>>, vector<1x32xf32>
      %75 = vector.shape_cast %74 : vector<1x32xf32> to vector<1x32xf32>
      %76 = vector.broadcast %75 : vector<1x32xf32> to vector<32x32xf32>
      %c0_39 = arith.constant 0 : index
      %c0_40 = arith.constant 0 : index
      %77 = vector.load %arg5[%c0_39, %c0_40] : memref<32x32xf32, #tpu.memory_space<vmem>>, vector<32x32xf32>
      tpu.vector_store %arg5[%c0_39, %c0_40], %76 {strides = array<i32>} : memref<32x32xf32, #tpu.memory_space<vmem>>, vector<32x32xf32>,
    } else {
    }
    %c0_i32_2 = arith.constant 0 : i32
    %5 = arith.cmpi eq, %arg1, %c0_i32_2 : i32
    %6 = arith.extui %5 : i1 to i32
    %c0_i32_3 = arith.constant 0 : i32
    %7 = arith.cmpi ne, %6, %c0_i32_3 : i32
    scf.if %7 {
      %c0_37 = arith.constant 0 : index
      %c0_38 = arith.constant 0 : index
      %74 = vector.load %arg5[%c0_37, %c0_38] : memref<32x32xf32, #tpu.memory_space<vmem>>, vector<32x32xf32>
      %c16_i32 = arith.constant 16 : i32
      %75 = tpu.dynamic_rotate %74 by %c16_i32 dim 0 : vector<32x32xf32>, i32 -> vector<32x32xf32>
      %c8 = arith.constant 8 : index
      %c0_39 = arith.constant 0 : index
      %76 = vector.load %arg3[%c8, %c0_39] : memref<336x64xf32, #tpu.memory_space<vmem>>, vector<64x64xf32>
      %77 = vector.extract_strided_slice %76 {offsets = [0, 0], sizes = [32, 64], strides = [1, 1]} : vector<64x64xf32> to vector<32x64xf32>
      %cst_40 = arith.constant dense<0.000000e+00> : vector<32x64xf32>
      %78 = tpu.matmul %74, %77, %cst_40 {dimension_numbers = #tpu.dot_dimension_numbers<[1], [0], [0], [1], [0, 0, 1, 1], [], []>} : vector<32x32xf32>, vector<32x64xf32>, vector<32x64xf32> -> vector<32x64xf32>
      %79 = vector.extract_strided_slice %76 {offsets = [32, 0], sizes = [32, 64], strides = [1, 1]} : vector<64x64xf32> to vector<32x64xf32>
      %cst_41 = arith.constant dense<0.000000e+00> : vector<32x64xf32>
      %80 = tpu.matmul %75, %79, %cst_41 {dimension_numbers = #tpu.dot_dimension_numbers<[1], [0], [0], [1], [0, 0, 1, 1], [], []>} : vector<32x32xf32>, vector<32x64xf32>, vector<32x64xf32> -> vector<32x64xf32>
      %81 = arith.addf %78, %80 : vector<32x64xf32>
      %82 = arith.truncf %81 : vector<32x64xf32> to vector<32x64xbf16>
      %83 = arith.extf %82 : vector<32x64xbf16> to vector<32x64xf32>
      %84 = arith.subf %81, %83 : vector<32x64xf32>
      %85 = arith.truncf %84 : vector<32x64xf32> to vector<32x64xbf16>
      %86 = tpu.concatenate %82, %85 in 1 : vector<32x64xbf16>, vector<32x64xbf16> -> vector<32x128xbf16>
      %c0_42 = arith.constant 0 : index
      %c0_43 = arith.constant 0 : index
      %87 = vector.load %arg6[%c0_42, %c0_43] : memref<32x128xbf16, #tpu.memory_space<vmem>>, vector<32x128xbf16>
      tpu.vector_store %arg6[%c0_42, %c0_43], %86 {strides = array<i32>} : memref<32x128xbf16, #tpu.memory_space<vmem>>, vector<32x128xbf16>,
      %cst_44 = arith.constant 0.000000e+00 : f32
      %88 = vector.broadcast %cst_44 : f32 to vector<32x96xf32>
      %c0_45 = arith.constant 0 : index
      %c0_46 = arith.constant 0 : index
      %89 = vector.load %arg7[%c0_45, %c0_46] : memref<32x96xf32, #tpu.memory_space<vmem>>, vector<32x96xf32>
      tpu.vector_store %arg7[%c0_45, %c0_46], %88 {strides = array<i32>} : memref<32x96xf32, #tpu.memory_space<vmem>>, vector<32x96xf32>,
      %cst_47 = arith.constant 0.000000e+00 : f32
      %90 = vector.broadcast %cst_47 : f32 to vector<1x32xf32>
      %c0_48 = arith.constant 0 : index
      %c0_49 = arith.constant 0 : index
      %91 = vector.load %arg8[%c0_48, %c0_49] : memref<1x32xf32, #tpu.memory_space<vmem>>, vector<1x32xf32>
      tpu.vector_store %arg8[%c0_48, %c0_49], %90 {strides = array<i32>} : memref<1x32xf32, #tpu.memory_space<vmem>>, vector<1x32xf32>,
      %cst_50 = arith.constant 0.000000e+00 : f32
      %92 = vector.broadcast %cst_50 : f32 to vector<1x32xf32>
      %c0_51 = arith.constant 0 : index
      %c0_52 = arith.constant 0 : index
      %93 = vector.load %arg9[%c0_51, %c0_52] : memref<1x32xf32, #tpu.memory_space<vmem>>, vector<1x32xf32>
      tpu.vector_store %arg9[%c0_51, %c0_52], %92 {strides = array<i32>} : memref<1x32xf32, #tpu.memory_space<vmem>>, vector<1x32xf32>,
    } else {
    }
    %c0 = arith.constant 0 : index
    %c0_4 = arith.constant 0 : index
    %8 = vector.load %arg2[%c0, %c0_4] : memref<32x32xi8, #tpu.memory_space<vmem>>, vector<32x32xi8>
    %9 = arith.sitofp %8 : vector<32x32xi8> to vector<32x32xbf16>
    %c0_5 = arith.constant 0 : index
    %c0_6 = arith.constant 0 : index
    %10 = vector.load %arg6[%c0_5, %c0_6] : memref<32x128xbf16, #tpu.memory_space<vmem>>, vector<32x128xbf16>
    %cst = arith.constant dense<0.000000e+00> : vector<32x128xf32>
    %11 = tpu.matmul %9, %10, %cst {dimension_numbers = #tpu.dot_dimension_numbers<[1], [0], [0], [1], [0, 0, 1, 1], [], []>} : vector<32x32xbf16>, vector<32x128xbf16>, vector<32x128xf32> -> vector<32x128xf32>
    %12 = vector.extract_strided_slice %11 {offsets = [0, 0], sizes = [32, 64], strides = [1, 1]} : vector<32x128xf32> to vector<32x64xf32>
    %13 = vector.extract_strided_slice %11 {offsets = [0, 64], sizes = [32, 64], strides = [1, 1]} : vector<32x128xf32> to vector<32x64xf32>
    %14 = arith.addf %12, %13 : vector<32x64xf32>
    %c72 = arith.constant 72 : index
    %c0_7 = arith.constant 0 : index
    %15 = vector.load %arg3[%c72, %c0_7] : memref<336x64xf32, #tpu.memory_space<vmem>>, vector<1x64xf32>
    %16 = vector.broadcast %15 : vector<1x64xf32> to vector<32x64xf32>
    %17 = arith.addf %14, %16 : vector<32x64xf32>
    %cst_8 = arith.constant 0.000000e+00 : f32
    %18 = vector.broadcast %cst_8 : f32 to vector<32x64xf32>
    %19 = arith.maximumf %17, %18 : vector<32x64xf32>
    %c80 = arith.constant 80 : index
    %c0_9 = arith.constant 0 : index
    %20 = vector.load %arg3[%c80, %c0_9] : memref<336x64xf32, #tpu.memory_space<vmem>>, vector<64x64xf32>
    %cst_10 = arith.constant dense<0.000000e+00> : vector<32x64xf32>
    %21 = tpu.matmul %19, %20, %cst_10 {dimension_numbers = #tpu.dot_dimension_numbers<[1], [0], [0], [1], [0, 0, 1, 1], [], []>} : vector<32x64xf32>, vector<64x64xf32>, vector<32x64xf32> -> vector<32x64xf32>
    %c144 = arith.constant 144 : index
    %c0_11 = arith.constant 0 : index
    %22 = vector.load %arg3[%c144, %c0_11] : memref<336x64xf32, #tpu.memory_space<vmem>>, vector<1x64xf32>
    %23 = vector.broadcast %22 : vector<1x64xf32> to vector<32x64xf32>
    %24 = arith.addf %21, %23 : vector<32x64xf32>
    %25 = vector.extract_strided_slice %24 {offsets = [0, 0], sizes = [32, 32], strides = [1, 1]} : vector<32x64xf32> to vector<32x32xf32>
    %cst_12 = arith.constant dense<0.000000e+00> : vector<32xf32>
    %26 = vector.multi_reduction <add>, %25, %cst_12 [0] : vector<32x32xf32> to vector<32xf32>
    %27 = vector.shape_cast %26 : vector<32xf32> to vector<1x32xf32>
    %cst_13 = arith.constant 3.125000e-02 : f32
    %28 = vector.broadcast %cst_13 : f32 to vector<1x32xf32>
    %29 = arith.mulf %27, %28 : vector<1x32xf32>
    %30 = vector.broadcast %29 : vector<1x32xf32> to vector<32x32xf32>
    %31 = arith.subf %25, %30 : vector<32x32xf32>
    %32 = arith.mulf %31, %31 : vector<32x32xf32>
    %cst_14 = arith.constant dense<0.000000e+00> : vector<32xf32>
    %33 = vector.multi_reduction <add>, %32, %cst_14 [0] : vector<32x32xf32> to vector<32xf32>
    %34 = vector.shape_cast %33 : vector<32xf32> to vector<1x32xf32>
    %c32_i32 = arith.constant 32 : i32
    %35 = arith.muli %arg1, %c32_i32 : i32
    %36 = arith.sitofp %35 : i32 to f32
    %cst_15 = arith.constant 3.200000e+01 : f32
    %37 = arith.addf %36, %cst_15 : f32
    %cst_16 = arith.constant 1.000000e+00 : f32
    %38 = arith.divf %cst_16, %37 : f32
    %c0_17 = arith.constant 0 : index
    %c0_18 = arith.constant 0 : index
    %39 = vector.load %arg8[%c0_17, %c0_18] : memref<1x32xf32, #tpu.memory_space<vmem>>, vector<1x32xf32>
    %40 = arith.subf %29, %39 : vector<1x32xf32>
    %c0_19 = arith.constant 0 : index
    %c0_20 = arith.constant 0 : index
    %41 = vector.load %arg8[%c0_19, %c0_20] : memref<1x32xf32, #tpu.memory_space<vmem>>, vector<1x32xf32>
    %cst_21 = arith.constant 3.200000e+01 : f32
    %42 = arith.mulf %cst_21, %38 : f32
    %43 = vector.broadcast %42 : f32 to vector<1x32xf32>
    %44 = arith.mulf %40, %43 : vector<1x32xf32>
    %45 = arith.addf %41, %44 : vector<1x32xf32>
    %c0_22 = arith.constant 0 : index
    %c0_23 = arith.constant 0 : index
    %46 = vector.load %arg8[%c0_22, %c0_23] : memref<1x32xf32, #tpu.memory_space<vmem>>, vector<1x32xf32>
    tpu.vector_store %arg8[%c0_22, %c0_23], %45 {strides = array<i32>} : memref<1x32xf32, #tpu.memory_space<vmem>>, vector<1x32xf32>,
    %c0_24 = arith.constant 0 : index
    %c0_25 = arith.constant 0 : index
    %47 = vector.load %arg9[%c0_24, %c0_25] : memref<1x32xf32, #tpu.memory_space<vmem>>, vector<1x32xf32>
    %48 = arith.addf %47, %34 : vector<1x32xf32>
    %49 = arith.mulf %40, %40 : vector<1x32xf32>
    %cst_26 = arith.constant 3.200000e+01 : f32
    %50 = arith.mulf %36, %cst_26 : f32
    %51 = arith.mulf %50, %38 : f32
    %52 = vector.broadcast %51 : f32 to vector<1x32xf32>
    %53 = arith.mulf %49, %52 : vector<1x32xf32>
    %54 = arith.addf %48, %53 : vector<1x32xf32>
    %c0_27 = arith.constant 0 : index
    %c0_28 = arith.constant 0 : index
    %55 = vector.load %arg9[%c0_27, %c0_28] : memref<1x32xf32, #tpu.memory_space<vmem>>, vector<1x32xf32>
    tpu.vector_store %arg9[%c0_27, %c0_28], %54 {strides = array<i32>} : memref<1x32xf32, #tpu.memory_space<vmem>>, vector<1x32xf32>,
    %56 = arith.truncf %24 : vector<32x64xf32> to vector<32x64xbf16>
    %57 = vector.extract_strided_slice %56 {offsets = [0, 0], sizes = [32, 32], strides = [1, 1]} : vector<32x64xbf16> to vector<32x32xbf16>
    %58 = arith.extf %57 : vector<32x32xbf16> to vector<32x32xf32>
    %59 = arith.subf %25, %58 : vector<32x32xf32>
    %60 = arith.truncf %59 : vector<32x32xf32> to vector<32x32xbf16>
    %61 = tpu.concatenate %56, %60 in 1 : vector<32x64xbf16>, vector<32x32xbf16> -> vector<32x96xbf16>
    %c0_29 = arith.constant 0 : index
    %c0_30 = arith.constant 0 : index
    %62 = vector.load %arg7[%c0_29, %c0_30] : memref<32x96xf32, #tpu.memory_space<vmem>>, vector<32x96xf32>
    %cst_31 = arith.constant dense<0.000000e+00> : vector<32x96xf32>
    %63 = tpu.matmul %9, %61, %cst_31 {dimension_numbers = #tpu.dot_dimension_numbers<[0], [0], [1], [1], [0, 1, 1, 1], [], []>} : vector<32x32xbf16>, vector<32x96xbf16>, vector<32x96xf32> -> vector<32x96xf32>
    %64 = arith.addf %62, %63 : vector<32x96xf32>
    %c0_32 = arith.constant 0 : index
    %c0_33 = arith.constant 0 : index
    %65 = vector.load %arg7[%c0_32, %c0_33] : memref<32x96xf32, #tpu.memory_space<vmem>>, vector<32x96xf32>
    tpu.vector_store %arg7[%c0_32, %c0_33], %64 {strides = array<i32>} : memref<32x96xf32, #tpu.memory_space<vmem>>, vector<32x96xf32>,
    %c2_i32 = arith.constant 2 : i32
    %66 = arith.cmpi eq, %arg1, %c2_i32 : i32
    %67 = arith.extui %66 : i1 to i32
    %c0_i32_34 = arith.constant 0 : i32
    %68 = arith.cmpi ne, %67, %c0_i32_34 : i32
    scf.if %68 {
      %c0_37 = arith.constant 0 : index
      %c0_38 = arith.constant 0 : index
      %74 = vector.load %arg8[%c0_37, %c0_38] : memref<1x32xf32, #tpu.memory_space<vmem>>, vector<1x32xf32>
      %c0_39 = arith.constant 0 : index
      %c0_40 = arith.constant 0 : index
      %75 = vector.load %arg9[%c0_39, %c0_40] : memref<1x32xf32, #tpu.memory_space<vmem>>, vector<1x32xf32>
      %c72_41 = arith.constant 72 : index
      %c0_42 = arith.constant 0 : index
      %76 = vector.load %arg3[%c72_41, %c0_42] : memref<336x64xf32, #tpu.memory_space<vmem>>, vector<1x64xf32>
      %cst_43 = arith.constant 0.000000e+00 : f32
      %77 = vector.broadcast %cst_43 : f32 to vector<1x64xf32>
      %78 = arith.maximumf %76, %77 : vector<1x64xf32>
      %c80_44 = arith.constant 80 : index
      %c0_45 = arith.constant 0 : index
      %79 = vector.load %arg3[%c80_44, %c0_45] : memref<336x64xf32, #tpu.memory_space<vmem>>, vector<64x64xf32>
      %cst_46 = arith.constant dense<0.000000e+00> : vector<1x64xf32>
      %80 = tpu.matmul %78, %79, %cst_46 {dimension_numbers = #tpu.dot_dimension_numbers<[1], [0], [0], [1], [0, 0, 1, 1], [], []>} : vector<1x64xf32>, vector<64x64xf32>, vector<1x64xf32> -> vector<1x64xf32>
      %c144_47 = arith.constant 144 : index
      %c0_48 = arith.constant 0 : index
      %81 = vector.load %arg3[%c144_47, %c0_48] : memref<336x64xf32, #tpu.memory_space<vmem>>, vector<1x64xf32>
      %82 = arith.addf %80, %81 : vector<1x64xf32>
      %83 = vector.extract_strided_slice %82 {offsets = [0, 0], sizes = [1, 32], strides = [1, 1]} : vector<1x64xf32> to vector<1x32xf32>
      %84 = arith.subf %74, %83 : vector<1x32xf32>
      %cst_49 = arith.constant 2.000000e-01 : f32
      %85 = vector.broadcast %cst_49 : f32 to vector<1x32xf32>
      %86 = arith.mulf %85, %84 : vector<1x32xf32>
      %87 = arith.addf %74, %86 : vector<1x32xf32>
      %88 = arith.subf %83, %74 : vector<1x32xf32>
      %cst_50 = arith.constant 1.600000e+01 : f32
      %89 = vector.broadcast %cst_50 : f32 to vector<1x32xf32>
      %90 = arith.mulf %89, %88 : vector<1x32xf32>
      %91 = arith.subf %83, %87 : vector<1x32xf32>
      %92 = arith.mulf %90, %91 : vector<1x32xf32>
      %93 = arith.subf %75, %92 : vector<1x32xf32>
      %cst_51 = arith.constant 0.0126582282 : f32
      %94 = vector.broadcast %cst_51 : f32 to vector<1x32xf32>
      %95 = arith.mulf %93, %94 : vector<1x32xf32>
      %cst_52 = arith.constant 0.000000e+00 : f32
      %96 = vector.broadcast %cst_52 : f32 to vector<1x32xf32>
      %97 = arith.maximumf %95, %96 : vector<1x32xf32>
      %98 = math.sqrt %97 : vector<1x32xf32>
      %cst_53 = arith.constant 1.000000e-10 : f32
      %99 = vector.broadcast %cst_53 : f32 to vector<1x32xf32>
      %100 = arith.addf %98, %99 : vector<1x32xf32>
      %cst_54 = arith.constant 1.000000e+00 : f32
      %101 = vector.broadcast %cst_54 : f32 to vector<1x32xf32>
      %102 = arith.divf %101, %100 : vector<1x32xf32>
      %c0_55 = arith.constant 0 : index
      %c0_56 = arith.constant 0 : index
      %103 = vector.load %arg7[%c0_55, %c0_56] : memref<32x96xf32, #tpu.memory_space<vmem>>, vector<32x32xf32>
      %c0_57 = arith.constant 0 : index
      %c64 = arith.constant 64 : index
      %104 = vector.load %arg7[%c0_57, %c64] : memref<32x96xf32, #tpu.memory_space<vmem>>, vector<32x32xf32>
      %105 = arith.addf %103, %104 : vector<32x32xf32>
      %c0_58 = arith.constant 0 : index
      %c32 = arith.constant 32 : index
      %106 = vector.load %arg7[%c0_58, %c32] : memref<32x96xf32, #tpu.memory_space<vmem>>, vector<32x1xf32>
      %107 = vector.broadcast %106 : vector<32x1xf32> to vector<32x32xf32>
      %108 = vector.broadcast %87 : vector<1x32xf32> to vector<32x32xf32>
      %109 = arith.mulf %107, %108 : vector<32x32xf32>
      %110 = arith.subf %105, %109 : vector<32x32xf32>
      %111 = vector.broadcast %102 : vector<1x32xf32> to vector<32x32xf32>
      %112 = arith.mulf %110, %111 : vector<32x32xf32>
      %c152 = arith.constant 152 : index
      %c0_59 = arith.constant 0 : index
      %113 = vector.load %arg3[%c152, %c0_59] : memref<336x64xf32, #tpu.memory_space<vmem>>, vector<32x32xf32>
      %cst_60 = arith.constant dense<0.000000e+00> : vector<32x32xf32>
      %114 = tpu.matmul %112, %113, %cst_60 {dimension_numbers = #tpu.dot_dimension_numbers<[1], [0], [0], [1], [0, 0, 1, 1], [], []>} : vector<32x32xf32>, vector<32x32xf32>, vector<32x32xf32> -> vector<32x32xf32>
      %c184 = arith.constant 184 : index
      %c0_61 = arith.constant 0 : index
      %115 = vector.load %arg3[%c184, %c0_61] : memref<336x64xf32, #tpu.memory_space<vmem>>, vector<1x32xf32>
      %116 = vector.broadcast %115 : vector<1x32xf32> to vector<32x32xf32>
      %117 = arith.addf %114, %116 : vector<32x32xf32>
      %cst_62 = arith.constant 0.000000e+00 : f32
      %118 = vector.broadcast %cst_62 : f32 to vector<32x32xf32>
      %119 = arith.maximumf %117, %118 : vector<32x32xf32>
      %c192 = arith.constant 192 : index
      %c0_63 = arith.constant 0 : index
      %120 = vector.load %arg3[%c192, %c0_63] : memref<336x64xf32, #tpu.memory_space<vmem>>, vector<32x32xf32>
      %cst_64 = arith.constant dense<0.000000e+00> : vector<32x32xf32>
      %121 = tpu.matmul %119, %120, %cst_64 {dimension_numbers = #tpu.dot_dimension_numbers<[1], [0], [0], [1], [0, 0, 1, 1], [], []>} : vector<32x32xf32>, vector<32x32xf32>, vector<32x32xf32> -> vector<32x32xf32>
      %c224 = arith.constant 224 : index
      %c0_65 = arith.constant 0 : index
      %122 = vector.load %arg3[%c224, %c0_65] : memref<336x64xf32, #tpu.memory_space<vmem>>, vector<1x32xf32>
      %123 = vector.broadcast %122 : vector<1x32xf32> to vector<32x32xf32>
      %124 = arith.addf %121, %123 : vector<32x32xf32>
      %c0_66 = arith.constant 0 : index
      %c0_67 = arith.constant 0 : index
      %125 = vector.load %arg5[%c0_66, %c0_67] : memref<32x32xf32, #tpu.memory_space<vmem>>, vector<32x32xf32>
      %cst_68 = arith.constant 1.000000e-01 : f32
      %126 = vector.broadcast %cst_68 : f32 to vector<32x32xf32>
      %127 = arith.mulf %126, %125 : vector<32x32xf32>
      %128 = arith.addf %124, %127 : vector<32x32xf32>
      %cst_69 = arith.constant dense<0.000000e+00> : vector<32xf32>
      %129 = vector.multi_reduction <add>, %128, %cst_69 [1] : vector<32x32xf32> to vector<32xf32>
      %130 = vector.shape_cast %129 : vector<32xf32> to vector<32x1xf32>
      %cst_70 = arith.constant 3.200000e+01 : f32
      %131 = vector.broadcast %cst_70 : f32 to vector<32x1xf32>
      %132 = arith.divf %130, %131 : vector<32x1xf32>
      %133 = vector.broadcast %132 : vector<32x1xf32> to vector<32x32xf32>
      %134 = arith.subf %128, %133 : vector<32x32xf32>
      %135 = arith.mulf %134, %134 : vector<32x32xf32>
      %cst_71 = arith.constant dense<0.000000e+00> : vector<32xf32>
      %136 = vector.multi_reduction <add>, %135, %cst_71 [1] : vector<32x32xf32> to vector<32xf32>
      %137 = vector.shape_cast %136 : vector<32xf32> to vector<32x1xf32>
      %cst_72 = arith.constant 3.200000e+01 : f32
      %138 = vector.broadcast %cst_72 : f32 to vector<32x1xf32>
      %139 = arith.divf %137, %138 : vector<32x1xf32>
      %cst_73 = arith.constant 9.99999974E-6 : f32
      %140 = vector.broadcast %cst_73 : f32 to vector<32x1xf32>
      %141 = arith.addf %139, %140 : vector<32x1xf32>
      %142 = math.rsqrt %141 : vector<32x1xf32>
      %143 = vector.broadcast %142 : vector<32x1xf32> to vector<32x32xf32>
      %144 = arith.mulf %134, %143 : vector<32x32xf32>
      %c232 = arith.constant 232 : index
      %c0_74 = arith.constant 0 : index
      %145 = vector.load %arg3[%c232, %c0_74] : memref<336x64xf32, #tpu.memory_space<vmem>>, vector<1x32xf32>
      %146 = vector.broadcast %145 : vector<1x32xf32> to vector<32x32xf32>
      %147 = arith.mulf %144, %146 : vector<32x32xf32>
      %c240 = arith.constant 240 : index
      %c0_75 = arith.constant 0 : index
      %148 = vector.load %arg3[%c240, %c0_75] : memref<336x64xf32, #tpu.memory_space<vmem>>, vector<1x32xf32>
      %149 = vector.broadcast %148 : vector<1x32xf32> to vector<32x32xf32>
      %150 = arith.addf %147, %149 : vector<32x32xf32>
      %c0_76 = arith.constant 0 : index
      %c0_77 = arith.constant 0 : index
      %151 = vector.load %arg5[%c0_76, %c0_77] : memref<32x32xf32, #tpu.memory_space<vmem>>, vector<32x32xf32>
      tpu.vector_store %arg5[%c0_76, %c0_77], %150 {strides = array<i32>} : memref<32x32xf32, #tpu.memory_space<vmem>>, vector<32x32xf32>,
    } else {
    }
    %c1_i32 = arith.constant 1 : i32
    %69 = arith.cmpi eq, %arg0, %c1_i32 : i32
    %c2_i32_35 = arith.constant 2 : i32
    %70 = arith.cmpi eq, %arg1, %c2_i32_35 : i32
    %71 = arith.andi %69, %70 : i1
    %72 = arith.extui %71 : i1 to i32
    %c0_i32_36 = arith.constant 0 : i32
    %73 = arith.cmpi ne, %72, %c0_i32_36 : i32
    scf.if %73 {
      %c0_37 = arith.constant 0 : index
      %c0_38 = arith.constant 0 : index
      %74 = vector.load %arg5[%c0_37, %c0_38] : memref<32x32xf32, #tpu.memory_space<vmem>>, vector<32x32xf32>
      %c248 = arith.constant 248 : index
      %c0_39 = arith.constant 0 : index
      %75 = vector.load %arg3[%c248, %c0_39] : memref<336x64xf32, #tpu.memory_space<vmem>>, vector<64x64xf32>
      %76 = vector.extract_strided_slice %74 {offsets = [0, 0], sizes = [16, 32], strides = [1, 1]} : vector<32x32xf32> to vector<16x32xf32>
      %77 = vector.extract_strided_slice %75 {offsets = [0, 0], sizes = [32, 64], strides = [1, 1]} : vector<64x64xf32> to vector<32x64xf32>
      %cst_40 = arith.constant dense<0.000000e+00> : vector<16x64xf32>
      %78 = tpu.matmul %76, %77, %cst_40 {dimension_numbers = #tpu.dot_dimension_numbers<[1], [0], [0], [1], [0, 0, 1, 1], [], []>} : vector<16x32xf32>, vector<32x64xf32>, vector<16x64xf32> -> vector<16x64xf32>
      %79 = vector.extract_strided_slice %74 {offsets = [16, 0], sizes = [16, 32], strides = [1, 1]} : vector<32x32xf32> to vector<16x32xf32>
      %80 = vector.extract_strided_slice %75 {offsets = [32, 0], sizes = [32, 64], strides = [1, 1]} : vector<64x64xf32> to vector<32x64xf32>
      %cst_41 = arith.constant dense<0.000000e+00> : vector<16x64xf32>
      %81 = tpu.matmul %79, %80, %cst_41 {dimension_numbers = #tpu.dot_dimension_numbers<[1], [0], [0], [1], [0, 0, 1, 1], [], []>} : vector<16x32xf32>, vector<32x64xf32>, vector<16x64xf32> -> vector<16x64xf32>
      %82 = arith.addf %78, %81 : vector<16x64xf32>
      %c312 = arith.constant 312 : index
      %c0_42 = arith.constant 0 : index
      %83 = vector.load %arg3[%c312, %c0_42] : memref<336x64xf32, #tpu.memory_space<vmem>>, vector<1x64xf32>
      %84 = vector.broadcast %83 : vector<1x64xf32> to vector<16x64xf32>
      %85 = arith.addf %82, %84 : vector<16x64xf32>
      %cst_43 = arith.constant 0.000000e+00 : f32
      %86 = vector.broadcast %cst_43 : f32 to vector<16x64xf32>
      %87 = arith.maximumf %85, %86 : vector<16x64xf32>
      %c320 = arith.constant 320 : index
      %c0_44 = arith.constant 0 : index
      %88 = vector.load %arg3[%c320, %c0_44] : memref<336x64xf32, #tpu.memory_space<vmem>>, vector<1x64xf32>
      %cst_45 = arith.constant dense<0.000000e+00> : vector<1x16xf32>
      %89 = tpu.matmul %88, %87, %cst_45 {dimension_numbers = #tpu.dot_dimension_numbers<[1], [1], [0], [0], [0, 0, 1, 0], [], []>} : vector<1x64xf32>, vector<16x64xf32>, vector<1x16xf32> -> vector<1x16xf32>
      %c328 = arith.constant 328 : index
      %c0_46 = arith.constant 0 : index
      %90 = vector.load %arg3[%c328, %c0_46] : memref<336x64xf32, #tpu.memory_space<vmem>>, vector<1x1xf32>
      %91 = vector.broadcast %90 : vector<1x1xf32> to vector<1x16xf32>
      %92 = arith.addf %89, %91 : vector<1x16xf32>
      %c0_47 = arith.constant 0 : index
      %c0_48 = arith.constant 0 : index
      %93 = vector.load %arg4[%c0_47, %c0_48] : memref<1x16xf32, #tpu.memory_space<vmem>>, vector<1x16xf32>
      tpu.vector_store %arg4[%c0_47, %c0_48], %92 {strides = array<i32>} : memref<1x16xf32, #tpu.memory_space<vmem>>, vector<1x16xf32>,
    } else {
    }
    return
  }
  func.func @transform_0(%arg0: i32, %arg1: i32) -> (i32, i32) {
    %c0_i32 = arith.constant 0 : i32
    %c0_i32_0 = arith.constant 0 : i32
    return %arg1, %c0_i32 : i32, i32
  }
  func.func @transform_1(%arg0: i32, %arg1: i32) -> (i32, i32) {
    %c0_i32 = arith.constant 0 : i32
    %c0_i32_0 = arith.constant 0 : i32
    %c0_i32_1 = arith.constant 0 : i32
    return %c0_i32, %c0_i32_0 : i32, i32
  }
  func.func @transform_2(%arg0: i32, %arg1: i32) -> (i32, i32) {
    %c0_i32 = arith.constant 0 : i32
    %c0_i32_0 = arith.constant 0 : i32
    %c0_i32_1 = arith.constant 0 : i32
    return %c0_i32, %c0_i32_0 : i32, i32
  }
}

</mosaic_0001>

<llo_original>
// kernel: tpu_custom_call.1
$region0: #{tpu_custom_call.1}
  #allocation0 [shape = 'u32[]', space=smem, size = 0x4, offset = 0x4, fixed_abs, tag = 'smem constant byte address 0x4 - core index']
  #allocation1 [shape = 'u32[144,128]{1,0:T(1,128)}', space=vmem, size = 0x12000, scoped, tag = 'internal scratch']
  #allocation2 [shape = 'f32[32,32]{1,0:T(8,128)}', space=vmem, size = 0x4000, scoped, tag = 'scratch operand']
  #allocation3 [shape = 'bf16[32,128]{1,0:T(16,128)(2,1)}', space=vmem, size = 0x2000, scoped, tag = 'scratch operand']
  #allocation4 [shape = 'f32[32,96]{1,0:T(8,128)}', space=vmem, size = 0x4000, scoped, tag = 'scratch operand']
  #allocation5 [shape = 'f32[1,32]{1,0:T(1,128)}', space=vmem, size = 0x200, scoped, tag = 'scratch operand']
  #allocation6 [shape = 'f32[1,32]{1,0:T(1,128)}', space=vmem, size = 0x200, scoped, tag = 'scratch operand']
  %s0 = inlined_call_operand.vmem [shape: s8[96,32], index: 0, kind: input, shape index: {}]
  %s1 = inlined_call_operand.vmem [shape: f32[336,64], index: 1, kind: input, shape index: {}]
  %s2 = inlined_call_operand.hbm [shape: f32[1,16], index: 2, kind: output, shape index: {}]
  %s3 = sld [smem:[#allocation0]]
  $region57: #{tpu_custom_call.1} parent=0
    _
  %s5 = ssub.s32 1, %s3
  %s6 = scalar_select 0, %s5, %s3
  $region1: #{tpu_custom_call.1} parent=0
    #allocation7 [shape = 'u8[512]{0}', space=vmem, size = 0x400, scoped, tag = 'output window, operand 0, single buffered']
    #allocation8 [shape = 's32[2]{0}', space=sflag, size = 0x8, scoped, tag = 'scoped memory for tpu_custom_call.1']
    %7 = vsyncpa [#allocation8], 0
    loop: start=0, step=1, limit=8
    $region2: #{tpu_custom_call.1} parent=1 // loop_pre_header
      _
    $region3: #{tpu_custom_call.1} parent=1 // loop_header
      %s9 = sphi 0, %s13
      %p10 = scmp.ge.s32.totalorder %s9, 8
      %s16 = sphi 0, %s28
      %s17 = sphi 0, %s24
      %s18 = sphi 0, %s16
      %s19 = sphi 0, %s17
      %s20 = sphi 0, %s18
      %s21 = sphi 0, %s19
      %s31 = sphi 0, %s33
      %s34 = sphi 0, %s31
      %s35 = sphi 0, %s34
      %s51 = sphi 0, %s35
      %s55 = sphi 0, %s55
      %s57 = sphi 0, %s55
      %s58 = sphi 0, %s57
      %s72 = sphi 0, %s58
      %s76 = sphi 0, %s76
      %s78 = sphi 0, %s76
      %s79 = sphi 0, %s78
      %s93 = sphi 0, %s79
    $region4: #{tpu_custom_call.1} parent=1 // loop_header_branch
      %12 = sbr.rel (%p10) target = $region8
    $region5: #{tpu_custom_call.1} parent=1 // loop_body
      %s14 = ssub.s32 %s9, 1
      %s15 = ssub.s32 %s9, 2
      %s22 = sadd.s32 1, %s17
      %p23 = scmp.ge.s32.totalorder %s22, 3
      %s24 = scalar_select %p23, 0, %s22
      %s25 = sadd.s32 1, %s16
      %s26 = scalar_select %p23, %s25, %s16
      %p27 = scmp.ge.s32.totalorder %s26, 2
      %s28 = scalar_select %p27, 0, %s26
      %s29 = ssub.s32 %s17, %s24
      %p30 = scmp.eq.s32.totalorder %s29, 0
      %s32 = sadd.s32 %s31, 1
      %s33 = scalar_select %p30, %s31, %s32
      %p36 = pneg %p30
      %p37 = scmp.eq.s32.totalorder %s9, 5
      %p38 = por %p36, %p37
      %p39 = scmp.ne.s32.totalorder %s31, %s34
      %p40 = scmp.eq.s32.totalorder %s9, 0
      %p41 = por %p39, %p40
      %p42 = scmp.ne.s32.totalorder %s31, %s34
      %p43 = scmp.eq.s32.totalorder %s14, 5
      %p44 = por %p42, %p43
      %p45 = scmp.ne.s32.totalorder %s34, %s35
      %p46 = scmp.eq.s32.totalorder %s14, 0
      %p47 = por %p45, %p46
      %p48 = scmp.ne.s32.totalorder %s34, %s35
      %p49 = scmp.eq.s32.totalorder %s15, 5
      %p50 = por %p48, %p49
      %p52 = scmp.ne.s32.totalorder %s35, %s51
      %p53 = scmp.eq.s32.totalorder %s15, 0
      %p54 = por %p52, %p53
      %s56 = sadd.s32 %s55, 1
      %p59 = scmp.eq.s32.totalorder %s9, 5
      %p60 = scmp.ne.s32.totalorder %s55, %s57
      %p61 = scmp.eq.s32.totalorder %s9, 0
      %p62 = por %p60, %p61
      %p63 = scmp.ne.s32.totalorder %s55, %s57
      %p64 = scmp.eq.s32.totalorder %s14, 5
      %p65 = por %p63, %p64
      %p66 = scmp.ne.s32.totalorder %s57, %s58
      %p67 = scmp.eq.s32.totalorder %s14, 0
      %p68 = por %p66, %p67
      %p69 = scmp.ne.s32.totalorder %s57, %s58
      %p70 = scmp.eq.s32.totalorder %s15, 5
      %p71 = por %p69, %p70
      %p73 = scmp.ne.s32.totalorder %s58, %s72
      %p74 = scmp.eq.s32.totalorder %s15, 0
      %p75 = por %p73, %p74
      %s77 = sadd.s32 %s76, 1
      %p80 = scmp.eq.s32.totalorder %s9, 5
      %p81 = scmp.ne.s32.totalorder %s76, %s78
      %p82 = scmp.eq.s32.totalorder %s9, 0
      %p83 = por %p81, %p82
      %p84 = scmp.ne.s32.totalorder %s76, %s78
      %p85 = scmp.eq.s32.totalorder %s14, 5
      %p86 = por %p84, %p85
      %p87 = scmp.ne.s32.totalorder %s78, %s79
      %p88 = scmp.eq.s32.totalorder %s14, 0
      %p89 = por %p87, %p88
      %p90 = scmp.ne.s32.totalorder %s78, %s79
      %p91 = scmp.eq.s32.totalorder %s15, 5
      %p92 = por %p90, %p91
      %p94 = scmp.ne.s32.totalorder %s79, %s93
      %p95 = scmp.eq.s32.totalorder %s15, 0
      %p96 = por %p94, %p95
      %p97 = scmp.le.s32.totalorder 1, %s9
      %p98 = scmp.lt.s32.totalorder %s9, 7
      %p99 = pnand %p97, %p98
      %p100 = pneg %p99
      // Predicated region
      $region9: #{tpu_custom_call.1} parent=5 // pred_check
        _
      $region10: #{tpu_custom_call.1} parent=5 // pred_check_branch
        %102 = sbr.rel (%p99) target = $region12
      $region11: #{tpu_custom_call.1} parent=5 // pred_region
        %s103 = ssub.s32 %s9, 1
        // Predicated region
        $region13: #{tpu_custom_call.1} parent=11 // pred_check
          %p104 = pneg %p68
        $region14: #{tpu_custom_call.1} parent=11 // pred_check_branch
          %106 = sbr.rel (%p104) target = $region16
        $region15: #{tpu_custom_call.1} parent=11 // pred_region
          _
        $region16: #{tpu_custom_call.1} parent=11 // pred_fallthru
          _
      $region12: #{tpu_custom_call.1} parent=5 // pred_fallthru
        _
      %p107 = scmp.lt.s32.totalorder %s9, 6
      // Predicated region
      $region17: #{tpu_custom_call.1} parent=5 // pred_check
        %p108 = pneg %p107
      $region18: #{tpu_custom_call.1} parent=5 // pred_check_branch
        %110 = sbr.rel (%p108) target = $region20
      $region19: #{tpu_custom_call.1} parent=5 // pred_region
        // Predicated region
        $region21: #{tpu_custom_call.1} parent=19 // pred_check
          %p111 = pneg %p41
        $region22: #{tpu_custom_call.1} parent=19 // pred_check_branch
          %113 = sbr.rel (%p111) target = $region24
        $region23: #{tpu_custom_call.1} parent=19 // pred_region
          %p114 = scmp.lt.s32.totalorder %s17, 2
          %s115 = scalar_select %p114, %s17, 2
          %s116 = smul.addr %s115, 8
          %s117 = scalar_lea.vmem %s0, %s116
        $region24: #{tpu_custom_call.1} parent=19 // pred_fallthru
          _
      $region20: #{tpu_custom_call.1} parent=5 // pred_fallthru
        _
      %p118 = scmp.le.s32.totalorder 1, %s9
      %p119 = scmp.lt.s32.totalorder %s9, 7
      %p120 = pnand %p118, %p119
      %p121 = pneg %p120
      // Predicated region
      $region25: #{tpu_custom_call.1} parent=5 // pred_check
        _
      $region26: #{tpu_custom_call.1} parent=5 // pred_check_branch
        %123 = sbr.rel (%p120) target = $region28
      $region27: #{tpu_custom_call.1} parent=5 // pred_region
        %s124 = ssub.s32 %s9, 1
        %p125 = scmp.lt.s32.totalorder %s19, 2
        %s126 = scalar_select %p125, %s19, 2
        %s127 = smul.addr %s126, 8
        %s128 = scalar_lea.vmem %s0, %s127
        %p129 = pneg %p47
        %p130 = pneg %p44
        %p131 = pneg %p68
        %p132 = pneg %p65
        %p133 = pneg %p89
        %p134 = pneg %p86
        %p135 = scmp.lt.s32.totalorder %s19, 2
        %s136 = scalar_select %p135, %s19, 2
        %s137 = smul.addr %s136, 8
        %s138 = scalar_lea.vmem %s0, %s137
        %p140 = scmp.eq.s32.totalorder %s18, 0
        %p141 = scmp.eq.s32.totalorder %s19, 0
        %p142 = pnand %p140, %p141
        %p143 = pneg %p142
        // Predicated region
        $region29: #{tpu_custom_call.1} parent=27 // pred_check
          _
        $region30: #{tpu_custom_call.1} parent=27 // pred_check_branch
          %145 = sbr.rel (%p142) target = $region32
        $region31: #{tpu_custom_call.1} parent=27 // pred_region
          %v146 = vld [vmem:[%s1] sm:$0x1]
          %v147 = vlaneseq
          %v148 = vshrl.u32 %v147, 7
          %v149 = vsub.s32 0, %v148
          %v150 = vrot.slane %v146, %v149
          %vm151 = vcmask 261120
          %152 = vst.msk [vmem:[#allocation2] sm:$0xff] %vm151, %v150
          %153 = vst.msk [vmem:[#allocation2 + $0x8] sm:$0xff] %vm151, %v150
          %154 = vst.msk [vmem:[#allocation2 + $0x10] sm:$0xff] %vm151, %v150
          %155 = vst.msk [vmem:[#allocation2 + $0x18] sm:$0xff] %vm151, %v150
        $region32: #{tpu_custom_call.1} parent=27 // pred_fallthru
          _
        // Predicated region
        $region33: #{tpu_custom_call.1} parent=27 // pred_check
          %p156 = pneg %p141
        $region34: #{tpu_custom_call.1} parent=27 // pred_check_branch
          %158 = sbr.rel (%p156) target = $region36
        $region35: #{tpu_custom_call.1} parent=27 // pred_region
          %v159 = vld [vmem:[#allocation2] sm:$0xff]
          %v160 = vld [vmem:[#allocation2 + $0x8] sm:$0xff]
          %v161 = vld [vmem:[#allocation2 + $0x10] sm:$0xff]
          %v162 = vld [vmem:[#allocation2 + $0x18] sm:$0xff]
          %v163 = vld [vmem:[%s1 + $0x8] sm:$0xff]
          %v164 = vld [vmem:[%s1 + $0x10] sm:$0xff]
          %v165 = vld [vmem:[%s1 + $0x18] sm:$0xff]
          %v166 = vld [vmem:[%s1 + $0x20] sm:$0xff]
          %v167 = vld [vmem:[%s1 + $0x28] sm:$0xff]
          %v168 = vld [vmem:[%s1 + $0x30] sm:$0xff]
          %v169 = vld [vmem:[%s1 + $0x38] sm:$0xff]
          %v170 = vld [vmem:[%s1 + $0x40] sm:$0xff]
          %vm171 = vcmask 261120
          %v173 = vsel %vm171, %v161, 0
          %v176 = vsel %vm171, %v162, 0
          %v179 = vsel %vm171, %v159, 0
          %v182 = vsel %vm171, %v160, 0
          %184 = vmatprep.subr.mxu0 0.0
          %185 = vmatpush1.msra.mxu0 %v167
          %186 = vmatprep.subr.mxu0 0.0
          %187 = vmatpush1.msra.mxu0 %v168
          %188 = vmatprep.subr.mxu0 0.0
          %189 = vmatpush1.msra.mxu0 %v169
          %190 = vmatprep.subr.mxu0 0.0
          %191 = vmatpush1.msra.mxu0 %v170
          %192 = vmatprep.subr.mxu0 0.0
          %193 = vmatpush1.msra.mxu0 0.0
          %194 = vmatprep.subr.mxu0 0.0
          %195 = vmatpush1.msra.mxu0 0.0
          %196 = vmatprep.subr.mxu0 0.0
          %197 = vmatpush1.msra.mxu0 0.0
          %198 = vmatprep.subr.mxu0 0.0
          %199 = vmatpush1.msra.mxu0 0.0
          %200 = vmatprep.subr.mxu0 0.0
          %201 = vmatpush1.msra.mxu0 0.0
          %202 = vmatprep.subr.mxu0 0.0
          %203 = vmatpush1.msra.mxu0 0.0
          %204 = vmatprep.subr.mxu0 0.0
          %205 = vmatpush1.msra.mxu0 0.0
          %206 = vmatprep.subr.mxu0 0.0
          %207 = vmatpush1.msra.mxu0 0.0
          %208 = vmatprep.subr.mxu0 0.0
          %209 = vmatpush1.msra.mxu0 0.0
          %210 = vmatprep.subr.mxu0 0.0
          %211 = vmatpush1.msra.mxu0 0.0
          %212 = vmatprep.subr.mxu0 0.0
          %213 = vmatpush1.msra.mxu0 0.0
          %214 = vmatprep.subr.mxu0 0.0
          %215 = vmatpush1.msra.mxu0 0.0
          %216 = vmatprep.subr.mxu0 0.0
          %217 = vmatpush1.msra.mxu0 0.0
          %218 = vmatprep.subr.mxu0 0.0
          %219 = vmatpush1.msra.mxu0 0.0
          %220 = vmatprep.subr.mxu0 0.0
          %221 = vmatpush1.msra.mxu0 0.0
          %222 = vmatprep.subr.mxu0 0.0
          %223 = vmatpush1.msra.mxu0 0.0
          %224 = vmatprep.subr.mxu0 0.0
          %225 = vmatpush1.msra.mxu0 0.0
          %226 = vmatprep.subr.mxu0 0.0
          %227 = vmatpush1.msra.mxu0 0.0
          %228 = vmatprep.subr.mxu0 0.0
          %229 = vmatpush1.msra.mxu0 0.0
          %230 = vmatprep.subr.mxu0 0.0
          %231 = vmatpush1.msra.mxu0 0.0
          %232 = vmatprep.subr.mxu0 0.0
          %233 = vmatpush1.msra.mxu0 0.0
          %234 = vmatprep.subr.mxu0 0.0
          %235 = vmatpush1.msra.mxu0 0.0
          %236 = vmatprep.subr.mxu0 0.0
          %237 = vmatpush1.msra.mxu0 0.0
          %238 = vmatprep.subr.mxu0 0.0
          %239 = vmatpush1.msra.mxu0 0.0
          %240 = vmatprep.subr.mxu0 0.0
          %241 = vmatpush1.msra.mxu0 0.0
          %242 = vmatprep.subr.mxu0 0.0
          %243 = vmatpush1.msra.mxu0 0.0
          %244 = vmatprep.subr.mxu0 0.0
          %245 = vmatpush1.msra.mxu0 0.0
          %246 = vmatprep.subr.mxu0 0.0
          %247 = vmatpush1.msra.mxu0 0.0
          %248 = vmatprep.mubr.f32.mxu0 0.0
          %249 = vmatmul.mubr.f32.gmra.mrb[0].mxu0 %v173
          %v250 = vpop.f32.mrb[0].mxu0
          %v251 = vadd.f32 0.0, %v250
          %v252 = vpop.f32.mrb[0].mxu0
          %253 = vmatprep.mubr.f32.mxu0 0.0
          %254 = vmatmul.mubr.f32.gmra.mrb[0].mxu0 %v176
          %v255 = vpop.f32.mrb[0].mxu0
          %v256 = vadd.f32 0.0, %v255
          %v257 = vpop.f32.mrb[0].mxu0
          %258 = vmatprep.mubr.f32.mxu0 0.0
          %259 = vmatmul.mubr.f32.gmra.mrb[0].mxu0 %v179
          %v260 = vpop.f32.mrb[0].mxu0
          %v261 = vadd.f32 0.0, %v260
          %v262 = vpop.f32.mrb[0].mxu0
          %263 = vmatprep.mubr.f32.mxu0 0.0
          %264 = vmatmul.mubr.f32.gmra.mrb[0].mxu0 %v182
          %v265 = vpop.f32.mrb[0].mxu0
          %v266 = vadd.f32 0.0, %v265
          %v267 = vpop.f32.mrb[0].mxu0
          %268 = vdwg.mxu0
          %269 = vmatprep.subr.mxu0 0.0
          %270 = vmatpush1.msra.mxu0 %v163
          %271 = vmatprep.subr.mxu0 0.0
          %272 = vmatpush1.msra.mxu0 %v164
          %273 = vmatprep.subr.mxu0 0.0
          %274 = vmatpush1.msra.mxu0 %v165
          %275 = vmatprep.subr.mxu0 0.0
          %276 = vmatpush1.msra.mxu0 %v166
          %277 = vmatprep.subr.mxu0 0.0
          %278 = vmatpush1.msra.mxu0 0.0
          %279 = vmatprep.subr.mxu0 0.0
          %280 = vmatpush1.msra.mxu0 0.0
          %281 = vmatprep.subr.mxu0 0.0
          %282 = vmatpush1.msra.mxu0 0.0
          %283 = vmatprep.subr.mxu0 0.0
          %284 = vmatpush1.msra.mxu0 0.0
          %285 = vmatprep.subr.mxu0 0.0
          %286 = vmatpush1.msra.mxu0 0.0
          %287 = vmatprep.subr.mxu0 0.0
          %288 = vmatpush1.msra.mxu0 0.0
          %289 = vmatprep.subr.mxu0 0.0
          %290 = vmatpush1.msra.mxu0 0.0
          %291 = vmatprep.subr.mxu0 0.0
          %292 = vmatpush1.msra.mxu0 0.0
          %293 = vmatprep.subr.mxu0 0.0
          %294 = vmatpush1.msra.mxu0 0.0
          %295 = vmatprep.subr.mxu0 0.0
          %296 = vmatpush1.msra.mxu0 0.0
          %297 = vmatprep.subr.mxu0 0.0
          %298 = vmatpush1.msra.mxu0 0.0
          %299 = vmatprep.subr.mxu0 0.0
          %300 = vmatpush1.msra.mxu0 0.0
          %301 = vmatprep.subr.mxu0 0.0
          %302 = vmatpush1.msra.mxu0 0.0
          %303 = vmatprep.subr.mxu0 0.0
          %304 = vmatpush1.msra.mxu0 0.0
          %305 = vmatprep.subr.mxu0 0.0
          %306 = vmatpush1.msra.mxu0 0.0
          %307 = vmatprep.subr.mxu0 0.0
          %308 = vmatpush1.msra.mxu0 0.0
          %309 = vmatprep.subr.mxu0 0.0
          %310 = vmatpush1.msra.mxu0 0.0
          %311 = vmatprep.subr.mxu0 0.0
          %312 = vmatpush1.msra.mxu0 0.0
          %313 = vmatprep.subr.mxu0 0.0
          %314 = vmatpush1.msra.mxu0 0.0
          %315 = vmatprep.subr.mxu0 0.0
          %316 = vmatpush1.msra.mxu0 0.0
          %317 = vmatprep.subr.mxu0 0.0
          %318 = vmatpush1.msra.mxu0 0.0
          %319 = vmatprep.subr.mxu0 0.0
          %320 = vmatpush1.msra.mxu0 0.0
          %321 = vmatprep.subr.mxu0 0.0
          %322 = vmatpush1.msra.mxu0 0.0
          %323 = vmatprep.subr.mxu0 0.0
          %324 = vmatpush1.msra.mxu0 0.0
          %325 = vmatprep.subr.mxu0 0.0
          %326 = vmatpush1.msra.mxu0 0.0
          %327 = vmatprep.subr.mxu0 0.0
          %328 = vmatpush1.msra.mxu0 0.0
          %329 = vmatprep.subr.mxu0 0.0
          %330 = vmatpush1.msra.mxu0 0.0
          %331 = vmatprep.subr.mxu0 0.0
          %332 = vmatpush1.msra.mxu0 0.0
          %333 = vmatprep.mubr.f32.mxu0 0.0
          %334 = vmatmul.mubr.f32.gmra.mrb[0].mxu0 %v179
          %v335 = vpop.f32.mrb[0].mxu0
          %v336 = vadd.f32 %v251, %v335
          %v337 = vpop.f32.mrb[0].mxu0
          %338 = vmatprep.mubr.f32.mxu0 0.0
          %339 = vmatmul.mubr.f32.gmra.mrb[0].mxu0 %v182
          %v340 = vpop.f32.mrb[0].mxu0
          %v341 = vadd.f32 %v256, %v340
          %v342 = vpop.f32.mrb[0].mxu0
          %343 = vmatprep.mubr.f32.mxu0 0.0
          %344 = vmatmul.mubr.f32.gmra.mrb[0].mxu0 %v173
          %v345 = vpop.f32.mrb[0].mxu0
          %v346 = vadd.f32 %v261, %v345
          %v347 = vpop.f32.mrb[0].mxu0
          %348 = vmatprep.mubr.f32.mxu0 0.0
          %349 = vmatmul.mubr.f32.gmra.mrb[0].mxu0 %v176
          %v350 = vpop.f32.mrb[0].mxu0
          %v351 = vadd.f32 %v266, %v350
          %v352 = vpop.f32.mrb[0].mxu0
          %353 = vdwg.mxu0
          %v354 = vpack.c.bf16 %v341, %v336
          %v355 = vpack.c.bf16 %v351, %v346
          %v356 = vunpack.c.l.bf16 %v354
          %v357 = vunpack.c.h.bf16 %v354
          %v358 = vunpack.c.l.bf16 %v355
          %v359 = vunpack.c.h.bf16 %v355
          %v360 = vsub.f32 %v336, %v356
          %v361 = vsub.f32 %v341, %v357
          %v362 = vsub.f32 %v346, %v358
          %v363 = vsub.f32 %v351, %v359
          %v364 = vpack.c.bf16 %v361, %v360
          %v365 = vpack.c.bf16 %v363, %v362
          %368 = vrot.lane.b32.xlu0 %v364, 64
          %v369 = vpop.permute.xlu0 %368
          %370 = vrot.lane.b32.xlu0 %v365, 64
          %v371 = vpop.permute.xlu0 %370
          %vm372 = vcmask 523264
          %v375 = vsel %vm372, %v354, %v369
          %v379 = vsel %vm372, %v355, %v371
          %381 = vst [vmem:[#allocation3] sm:$0xff] %v375
          %382 = vst [vmem:[#allocation3 + $0x8] sm:$0xff] %v379
          %vm383 = vcmask 785408
          %384 = vst.msk [vmem:[#allocation4] sm:$0xff] %vm383, 0.0
          %385 = vst.msk [vmem:[#allocation4 + $0x8] sm:$0xff] %vm383, 0.0
          %386 = vst.msk [vmem:[#allocation4 + $0x10] sm:$0xff] %vm383, 0.0
          %387 = vst.msk [vmem:[#allocation4 + $0x18] sm:$0xff] %vm383, 0.0
          %vm388 = vcmask 253952
          %389 = vst.msk [vmem:[#allocation5] sm:$0x1] %vm388, 0.0
          %390 = vst.msk [vmem:[#allocation6] sm:$0x1] %vm388, 0.0
        $region36: #{tpu_custom_call.1} parent=27 // pred_fallthru
          _
        %v391 = vld [vmem:[%s138] sm:$0xff]
        %v392 = vunpack.c.l.s8.bf16 %v391
        %v393 = vunpack.c.h.s8.bf16 %v391
        %v394 = vld [vmem:[#allocation3] sm:$0xff]
        %v395 = vld [vmem:[#allocation3 + $0x8] sm:$0xff]
        %vm396 = vcmask 261120
        %v398 = vsel %vm396, %v392, 0
        %v401 = vsel %vm396, %v393, 0
        %403 = vmatprep.subr.bf16.mxu0 0
        %404 = vmatpush1.bf16.msra.mxu0 %v394
        %405 = vmatprep.subr.bf16.mxu0 0
        %406 = vmatpush1.bf16.msra.mxu0 %v395
        %407 = vmatprep.subr.bf16.mxu0 0
        %408 = vmatpush1.bf16.msra.mxu0 0
        %409 = vmatprep.subr.bf16.mxu0 0
        %410 = vmatpush1.bf16.msra.mxu0 0
        %411 = vmatprep.subr.bf16.mxu0 0
        %412 = vmatpush1.bf16.msra.mxu0 0
        %413 = vmatprep.subr.bf16.mxu0 0
        %414 = vmatpush1.bf16.msra.mxu0 0
        %415 = vmatprep.subr.bf16.mxu0 0
        %416 = vmatpush1.bf16.msra.mxu0 0
        %417 = vmatprep.subr.bf16.mxu0 0
        %418 = vmatpush1.bf16.msra.mxu0 0
        %419 = vmatprep.subr.bf16.mxu0 0
        %420 = vmatpush1.bf16.msra.mxu0 0
        %421 = vmatprep.subr.bf16.mxu0 0
        %422 = vmatpush1.bf16.msra.mxu0 0
        %423 = vmatprep.subr.bf16.mxu0 0
        %424 = vmatpush1.bf16.msra.mxu0 0
        %425 = vmatprep.subr.bf16.mxu0 0
        %426 = vmatpush1.bf16.msra.mxu0 0
        %427 = vmatprep.subr.bf16.mxu0 0
        %428 = vmatpush1.bf16.msra.mxu0 0
        %429 = vmatprep.subr.bf16.mxu0 0
        %430 = vmatpush1.bf16.msra.mxu0 0
        %431 = vmatprep.subr.bf16.mxu0 0
        %432 = vmatpush1.bf16.msra.mxu0 0
        %433 = vmatprep.subr.bf16.mxu0 0
        %434 = vmatpush1.bf16.msra.mxu0 0
        %435 = vmatprep.mubr.bf16.mxu0 0
        %436 = vmatmul.mubr.bf16.gmra.mrb[0].mxu0 %v398
        %v437 = vpop.f32.mrb[0].mxu0
        %v438 = vadd.f32 0.0, %v437
        %v439 = vpop.f32.mrb[0].mxu0
        %v440 = vpop.f32.mrb[0].mxu0
        %v441 = vadd.f32 0.0, %v440
        %v442 = vpop.f32.mrb[0].mxu0
        %443 = vmatprep.mubr.bf16.mxu0 0
        %444 = vmatmul.mubr.bf16.gmra.mrb[0].mxu0 %v401
        %v445 = vpop.f32.mrb[0].mxu0
        %v446 = vadd.f32 0.0, %v445
        %v447 = vpop.f32.mrb[0].mxu0
        %v448 = vpop.f32.mrb[0].mxu0
        %v449 = vadd.f32 0.0, %v448
        %v450 = vpop.f32.mrb[0].mxu0
        %451 = vdwg.mxu0
        %456 = vrot.lane.b32.xlu0 %v438, 64
        %v457 = vpop.permute.xlu0 %456
        %458 = vrot.lane.b32.xlu0 %v441, 64
        %v459 = vpop.permute.xlu0 %458
        %460 = vrot.lane.b32.xlu0 %v446, 64
        %v461 = vpop.permute.xlu0 %460
        %462 = vrot.lane.b32.xlu0 %v449, 64
        %v463 = vpop.permute.xlu0 %462
        %v468 = vadd.f32 %v438, %v457
        %v469 = vadd.f32 %v441, %v459
        %v470 = vadd.f32 %v446, %v461
        %v471 = vadd.f32 %v449, %v463
        %v472 = vld [vmem:[%s1 + $0x48] sm:$0x1]
        %v473 = vlaneseq
        %v474 = vshrl.u32 %v473, 7
        %v475 = vsub.s32 0, %v474
        %v476 = vrot.slane %v472, %v475
        %v477 = vadd.f32 %v468, %v476
        %v478 = vadd.f32 %v469, %v476
        %v479 = vadd.f32 %v470, %v476
        %v480 = vadd.f32 %v471, %v476
        %v481 = vmax.f32 %v477, 0.0
        %v482 = vmax.f32 %v478, 0.0
        %v483 = vmax.f32 %v479, 0.0
        %v484 = vmax.f32 %v480, 0.0
        %v485 = vld [vmem:[%s1 + $0x50] sm:$0xff]
        %v486 = vld [vmem:[%s1 + $0x58] sm:$0xff]
        %v487 = vld [vmem:[%s1 + $0x60] sm:$0xff]
        %v488 = vld [vmem:[%s1 + $0x68] sm:$0xff]
        %v489 = vld [vmem:[%s1 + $0x70] sm:$0xff]
        %v490 = vld [vmem:[%s1 + $0x78] sm:$0xff]
        %v491 = vld [vmem:[%s1 + $0x80] sm:$0xff]
        %v492 = vld [vmem:[%s1 + $0x88] sm:$0xff]
        %v493 = vld [vmem:[%s1 + $0x90] sm:$0x1]
        %v494 = vlaneseq
        %v495 = vshrl.u32 %v494, 7
        %v496 = vsub.s32 0, %v495
        %v497 = vrot.slane %v493, %v496
        %vm498 = vcmask 523264
        %v500 = vsel %vm498, %v481, 0
        %v503 = vsel %vm498, %v482, 0
        %v506 = vsel %vm498, %v483, 0
        %v509 = vsel %vm498, %v484, 0
        %511 = vmatprep.subr.mxu0 0.0
        %512 = vmatpush1.msra.mxu0 %v485
        %513 = vmatprep.subr.mxu0 0.0
        %514 = vmatpush1.msra.mxu0 %v486
        %515 = vmatprep.subr.mxu0 0.0
        %516 = vmatpush1.msra.mxu0 %v487
        %517 = vmatprep.subr.mxu0 0.0
        %518 = vmatpush1.msra.mxu0 %v488
        %519 = vmatprep.subr.mxu0 0.0
        %520 = vmatpush1.msra.mxu0 %v489
        %521 = vmatprep.subr.mxu0 0.0
        %522 = vmatpush1.msra.mxu0 %v490
        %523 = vmatprep.subr.mxu0 0.0
        %524 = vmatpush1.msra.mxu0 %v491
        %525 = vmatprep.subr.mxu0 0.0
        %526 = vmatpush1.msra.mxu0 %v492
        %527 = vmatprep.subr.mxu0 0.0
        %528 = vmatpush1.msra.mxu0 0.0
        %529 = vmatprep.subr.mxu0 0.0
        %530 = vmatpush1.msra.mxu0 0.0
        %531 = vmatprep.subr.mxu0 0.0
        %532 = vmatpush1.msra.mxu0 0.0
        %533 = vmatprep.subr.mxu0 0.0
        %534 = vmatpush1.msra.mxu0 0.0
        %535 = vmatprep.subr.mxu0 0.0
        %536 = vmatpush1.msra.mxu0 0.0
        %537 = vmatprep.subr.mxu0 0.0
        %538 = vmatpush1.msra.mxu0 0.0
        %539 = vmatprep.subr.mxu0 0.0
        %540 = vmatpush1.msra.mxu0 0.0
        %541 = vmatprep.subr.mxu0 0.0
        %542 = vmatpush1.msra.mxu0 0.0
        %543 = vmatprep.subr.mxu0 0.0
        %544 = vmatpush1.msra.mxu0 0.0
        %545 = vmatprep.subr.mxu0 0.0
        %546 = vmatpush1.msra.mxu0 0.0
        %547 = vmatprep.subr.mxu0 0.0
        %548 = vmatpush1.msra.mxu0 0.0
        %549 = vmatprep.subr.mxu0 0.0
        %550 = vmatpush1.msra.mxu0 0.0
        %551 = vmatprep.subr.mxu0 0.0
        %552 = vmatpush1.msra.mxu0 0.0
        %553 = vmatprep.subr.mxu0 0.0
        %554 = vmatpush1.msra.mxu0 0.0
        %555 = vmatprep.subr.mxu0 0.0
        %556 = vmatpush1.msra.mxu0 0.0
        %557 = vmatprep.subr.mxu0 0.0
        %558 = vmatpush1.msra.mxu0 0.0
        %559 = vmatprep.subr.mxu0 0.0
        %560 = vmatpush1.msra.mxu0 0.0
        %561 = vmatprep.subr.mxu0 0.0
        %562 = vmatpush1.msra.mxu0 0.0
        %563 = vmatprep.subr.mxu0 0.0
        %564 = vmatpush1.msra.mxu0 0.0
        %565 = vmatprep.subr.mxu0 0.0
        %566 = vmatpush1.msra.mxu0 0.0
        %567 = vmatprep.subr.mxu0 0.0
        %568 = vmatpush1.msra.mxu0 0.0
        %569 = vmatprep.subr.mxu0 0.0
        %570 = vmatpush1.msra.mxu0 0.0
        %571 = vmatprep.subr.mxu0 0.0
        %572 = vmatpush1.msra.mxu0 0.0
        %573 = vmatprep.subr.mxu0 0.0
        %574 = vmatpush1.msra.mxu0 0.0
        %575 = vmatprep.mubr.f32.mxu0 0.0
        %576 = vmatmul.mubr.f32.gmra.mrb[0].mxu0 %v500
        %v577 = vpop.f32.mrb[0].mxu0
        %v578 = vadd.f32 %v497, %v577
        %v579 = vpop.f32.mrb[0].mxu0
        %580 = vmatprep.mubr.f32.mxu0 0.0
        %581 = vmatmul.mubr.f32.gmra.mrb[0].mxu0 %v503
        %v582 = vpop.f32.mrb[0].mxu0
        %v583 = vadd.f32 %v497, %v582
        %v584 = vpop.f32.mrb[0].mxu0
        %585 = vmatprep.mubr.f32.mxu0 0.0
        %586 = vmatmul.mubr.f32.gmra.mrb[0].mxu0 %v506
        %v587 = vpop.f32.mrb[0].mxu0
        %v588 = vadd.f32 %v497, %v587
        %v589 = vpop.f32.mrb[0].mxu0
        %590 = vmatprep.mubr.f32.mxu0 0.0
        %591 = vmatmul.mubr.f32.gmra.mrb[0].mxu0 %v509
        %v592 = vpop.f32.mrb[0].mxu0
        %v593 = vadd.f32 %v497, %v592
        %v594 = vpop.f32.mrb[0].mxu0
        %595 = vdwg.mxu0
        %v596 = vsel %vm396, %v578, 0.0
        %v597 = vsel %vm396, %v583, 0.0
        %v598 = vadd.f32 %v596, %v597
        %v599 = vsel %vm396, %v588, 0.0
        %v600 = vadd.f32 %v598, %v599
        %v601 = vsel %vm396, %v593, 0.0
        %v602 = vadd.f32 %v600, %v601
        %v603 = vrot.slane %v602, 4
        %v604 = vadd.f32 %v602, %v603
        %v605 = vrot.slane %v604, 2
        %v606 = vadd.f32 %v604, %v605
        %v607 = vrot.slane %v606, 1
        %v608 = vadd.f32 %v606, %v607
        %v609 = vmul.f32 %v608, 0.03125
        %v610 = vsub.f32 %v578, %v609
        %v611 = vsub.f32 %v583, %v609
        %v612 = vsub.f32 %v588, %v609
        %v613 = vsub.f32 %v593, %v609
        %v614 = vmul.f32 %v610, %v610
        %v615 = vmul.f32 %v611, %v611
        %v616 = vmul.f32 %v612, %v612
        %v617 = vmul.f32 %v613, %v613
        %v618 = vsel %vm396, %v614, 0.0
        %v619 = vsel %vm396, %v615, 0.0
        %v620 = vadd.f32 %v618, %v619
        %v621 = vsel %vm396, %v616, 0.0
        %v622 = vadd.f32 %v620, %v621
        %v623 = vsel %vm396, %v617, 0.0
        %v624 = vadd.f32 %v622, %v623
        %v625 = vrot.slane %v624, 4
        %v626 = vadd.f32 %v624, %v625
        %v627 = vrot.slane %v626, 2
        %v628 = vadd.f32 %v626, %v627
        %v629 = vrot.slane %v628, 1
        %v630 = vadd.f32 %v628, %v629
        %s631 = smul.u32 %s19, 32
        %s632 = scvt.s32.f32 %s631
        %s633 = sadd.f32 %s632, 32.0
        %v634 = vstv %s633
        %v635 = vrcp.pop %v634
        %s636 = vtos %v635
        %v637 = vld [vmem:[#allocation5] sm:$0x1]
        %v638 = vsub.f32 %v609, %v637
        %s639 = smul.f32 %s636, 32.0
        %v640 = vstv %s639
        %v641 = vmul.f32 %v638, %v640
        %v642 = vadd.f32 %v637, %v641
        %vm643 = vcmask 253952
        %644 = vst.msk [vmem:[#allocation5] sm:$0x1] %vm643, %v642
        %v645 = vld [vmem:[#allocation6] sm:$0x1]
        %v646 = vadd.f32 %v645, %v630
        %v647 = vmul.f32 %v638, %v638
        %s648 = smul.f32 %s632, 32.0
        %s649 = smul.f32 %s648, %s636
        %v650 = vstv %s649
        %v651 = vmul.f32 %v647, %v650
        %v652 = vadd.f32 %v646, %v651
        %653 = vst.msk [vmem:[#allocation6] sm:$0x1] %vm643, %v652
        %v654 = vpack.c.bf16 %v583, %v578
        %v655 = vpack.c.bf16 %v593, %v588
        %v656 = vunpack.c.l.bf16 %v654
        %v657 = vunpack.c.h.bf16 %v654
        %v658 = vunpack.c.l.bf16 %v655
        %v659 = vunpack.c.h.bf16 %v655
        %v660 = vsub.f32 %v578, %v656
        %v661 = vsub.f32 %v583, %v657
        %v662 = vsub.f32 %v588, %v658
        %v663 = vsub.f32 %v593, %v659
        %v664 = vpack.c.bf16 %v661, %v660
        %v665 = vpack.c.bf16 %v663, %v662
        %668 = vrot.lane.b32.xlu0 %v664, 64
        %v669 = vpop.permute.xlu0 %668
        %670 = vrot.lane.b32.xlu0 %v665, 64
        %v671 = vpop.permute.xlu0 %670
        %v674 = vsel %vm498, %v654, %v669
        %v678 = vsel %vm498, %v655, %v671
        %v680 = vld [vmem:[#allocation4] sm:$0xff]
        %v681 = vld [vmem:[#allocation4 + $0x8] sm:$0xff]
        %v682 = vld [vmem:[#allocation4 + $0x10] sm:$0xff]
        %v683 = vld [vmem:[#allocation4 + $0x18] sm:$0xff]
        %684 = vxpose.xlu0.c.b16.start [1/8] %v392, 128
        %685 = vxpose.xlu0.c.b16.cont [2/8] %v393, 128
        %686 = vxpose.xlu0.c.b16.cont [3/8] 0, 128
        %687 = vxpose.xlu0.c.b16.cont [4/8] 0, 128
        %688 = vxpose.xlu0.c.b16.cont [5/8] 0, 128
        %689 = vxpose.xlu0.c.b16.cont [6/8] 0, 128
        %690 = vxpose.xlu0.c.b16.cont [7/8] 0, 128
        %691 = vxpose.xlu0.c.b16.end [8/8] 0, 128
        %v692 = vpop.trf.xlu0
        %v693 = vpop.trf.xlu0
        %v694 = vpop.trf.xlu0
        %v695 = vpop.trf.xlu0
        %v696 = vpop.trf.xlu0
        %v697 = vpop.trf.xlu0
        %v698 = vpop.trf.xlu0
        %v699 = vpop.trf.xlu0
        %v701 = vsel %vm396, %v692, 0
        %v704 = vsel %vm396, %v693, 0
        %706 = vmatprep.subr.bf16.mxu0 0
        %707 = vmatpush1.bf16.msra.mxu0 %v674
        %708 = vmatprep.subr.bf16.mxu0 0
        %709 = vmatpush1.bf16.msra.mxu0 %v678
        %710 = vmatprep.subr.bf16.mxu0 0
        %711 = vmatpush1.bf16.msra.mxu0 0
        %712 = vmatprep.subr.bf16.mxu0 0
        %713 = vmatpush1.bf16.msra.mxu0 0
        %714 = vmatprep.subr.bf16.mxu0 0
        %715 = vmatpush1.bf16.msra.mxu0 0
        %716 = vmatprep.subr.bf16.mxu0 0
        %717 = vmatpush1.bf16.msra.mxu0 0
        %718 = vmatprep.subr.bf16.mxu0 0
        %719 = vmatpush1.bf16.msra.mxu0 0
        %720 = vmatprep.subr.bf16.mxu0 0
        %721 = vmatpush1.bf16.msra.mxu0 0
        %722 = vmatprep.subr.bf16.mxu0 0
        %723 = vmatpush1.bf16.msra.mxu0 0
        %724 = vmatprep.subr.bf16.mxu0 0
        %725 = vmatpush1.bf16.msra.mxu0 0
        %726 = vmatprep.subr.bf16.mxu0 0
        %727 = vmatpush1.bf16.msra.mxu0 0
        %728 = vmatprep.subr.bf16.mxu0 0
        %729 = vmatpush1.bf16.msra.mxu0 0
        %730 = vmatprep.subr.bf16.mxu0 0
        %731 = vmatpush1.bf16.msra.mxu0 0
        %732 = vmatprep.subr.bf16.mxu0 0
        %733 = vmatpush1.bf16.msra.mxu0 0
        %734 = vmatprep.subr.bf16.mxu0 0
        %735 = vmatpush1.bf16.msra.mxu0 0
        %736 = vmatprep.subr.bf16.mxu0 0
        %737 = vmatpush1.bf16.msra.mxu0 0
        %738 = vmatprep.mubr.bf16.mxu0 0
        %739 = vmatmul.mubr.bf16.gmra.mrb[0].mxu0 %v701
        %v740 = vpop.f32.mrb[0].mxu0
        %v741 = vadd.f32 0.0, %v740
        %v742 = vpop.f32.mrb[0].mxu0
        %v743 = vpop.f32.mrb[0].mxu0
        %v744 = vadd.f32 0.0, %v743
        %v745 = vpop.f32.mrb[0].mxu0
        %746 = vmatprep.mubr.bf16.mxu0 0
        %747 = vmatmul.mubr.bf16.gmra.mrb[0].mxu0 %v704
        %v748 = vpop.f32.mrb[0].mxu0
        %v749 = vadd.f32 0.0, %v748
        %v750 = vpop.f32.mrb[0].mxu0
        %v751 = vpop.f32.mrb[0].mxu0
        %v752 = vadd.f32 0.0, %v751
        %v753 = vpop.f32.mrb[0].mxu0
        %754 = vdwg.mxu0
        %v755 = vadd.f32 %v680, %v741
        %v756 = vadd.f32 %v681, %v744
        %v757 = vadd.f32 %v682, %v749
        %v758 = vadd.f32 %v683, %v752
        %vm759 = vcmask 785408
        %760 = vst.msk [vmem:[#allocation4] sm:$0xff] %vm759, %v755
        %761 = vst.msk [vmem:[#allocation4 + $0x8] sm:$0xff] %vm759, %v756
        %762 = vst.msk [vmem:[#allocation4 + $0x10] sm:$0xff] %vm759, %v757
        %763 = vst.msk [vmem:[#allocation4 + $0x18] sm:$0xff] %vm759, %v758
        %p764 = scmp.eq.s32.totalorder %s19, 2
        // Predicated region
        $region37: #{tpu_custom_call.1} parent=27 // pred_check
          %p765 = pneg %p764
        $region38: #{tpu_custom_call.1} parent=27 // pred_check_branch
          %767 = sbr.rel (%p765) target = $region40
        $region39: #{tpu_custom_call.1} parent=27 // pred_region
          %v768 = vld [vmem:[#allocation5] sm:$0x1]
          %v769 = vld [vmem:[#allocation6] sm:$0x1]
          %v770 = vld [vmem:[%s1 + $0x48] sm:$0x1]
          %v771 = vmax.f32 %v770, 0.0
          %v772 = vld [vmem:[%s1 + $0x50] sm:$0xff]
          %v773 = vld [vmem:[%s1 + $0x58] sm:$0xff]
          %v774 = vld [vmem:[%s1 + $0x60] sm:$0xff]
          %v775 = vld [vmem:[%s1 + $0x68] sm:$0xff]
          %v776 = vld [vmem:[%s1 + $0x70] sm:$0xff]
          %v777 = vld [vmem:[%s1 + $0x78] sm:$0xff]
          %v778 = vld [vmem:[%s1 + $0x80] sm:$0xff]
          %v779 = vld [vmem:[%s1 + $0x88] sm:$0xff]
          %v780 = vld [vmem:[%s1 + $0x90] sm:$0x1]
          %v782 = vsel %vm498, %v771, 0
          %784 = vmatprep.subr.mxu0 0.0
          %785 = vmatpush1.msra.mxu0 %v772
          %786 = vmatprep.subr.mxu0 0.0
          %787 = vmatpush1.msra.mxu0 %v773
          %788 = vmatprep.subr.mxu0 0.0
          %789 = vmatpush1.msra.mxu0 %v774
          %790 = vmatprep.subr.mxu0 0.0
          %791 = vmatpush1.msra.mxu0 %v775
          %792 = vmatprep.subr.mxu0 0.0
          %793 = vmatpush1.msra.mxu0 %v776
          %794 = vmatprep.subr.mxu0 0.0
          %795 = vmatpush1.msra.mxu0 %v777
          %796 = vmatprep.subr.mxu0 0.0
          %797 = vmatpush1.msra.mxu0 %v778
          %798 = vmatprep.subr.mxu0 0.0
          %799 = vmatpush1.msra.mxu0 %v779
          %800 = vmatprep.subr.mxu0 0.0
          %801 = vmatpush1.msra.mxu0 0.0
          %802 = vmatprep.subr.mxu0 0.0
          %803 = vmatpush1.msra.mxu0 0.0
          %804 = vmatprep.subr.mxu0 0.0
          %805 = vmatpush1.msra.mxu0 0.0
          %806 = vmatprep.subr.mxu0 0.0
          %807 = vmatpush1.msra.mxu0 0.0
          %808 = vmatprep.subr.mxu0 0.0
          %809 = vmatpush1.msra.mxu0 0.0
          %810 = vmatprep.subr.mxu0 0.0
          %811 = vmatpush1.msra.mxu0 0.0
          %812 = vmatprep.subr.mxu0 0.0
          %813 = vmatpush1.msra.mxu0 0.0
          %814 = vmatprep.subr.mxu0 0.0
          %815 = vmatpush1.msra.mxu0 0.0
          %816 = vmatprep.subr.mxu0 0.0
          %817 = vmatpush1.msra.mxu0 0.0
          %818 = vmatprep.subr.mxu0 0.0
          %819 = vmatpush1.msra.mxu0 0.0
          %820 = vmatprep.subr.mxu0 0.0
          %821 = vmatpush1.msra.mxu0 0.0
          %822 = vmatprep.subr.mxu0 0.0
          %823 = vmatpush1.msra.mxu0 0.0
          %824 = vmatprep.subr.mxu0 0.0
          %825 = vmatpush1.msra.mxu0 0.0
          %826 = vmatprep.subr.mxu0 0.0
          %827 = vmatpush1.msra.mxu0 0.0
          %828 = vmatprep.subr.mxu0 0.0
          %829 = vmatpush1.msra.mxu0 0.0
          %830 = vmatprep.subr.mxu0 0.0
          %831 = vmatpush1.msra.mxu0 0.0
          %832 = vmatprep.subr.mxu0 0.0
          %833 = vmatpush1.msra.mxu0 0.0
          %834 = vmatprep.subr.mxu0 0.0
          %835 = vmatpush1.msra.mxu0 0.0
          %836 = vmatprep.subr.mxu0 0.0
          %837 = vmatpush1.msra.mxu0 0.0
          %838 = vmatprep.subr.mxu0 0.0
          %839 = vmatpush1.msra.mxu0 0.0
          %840 = vmatprep.subr.mxu0 0.0
          %841 = vmatpush1.msra.mxu0 0.0
          %842 = vmatprep.subr.mxu0 0.0
          %843 = vmatpush1.msra.mxu0 0.0
          %844 = vmatprep.subr.mxu0 0.0
          %845 = vmatpush1.msra.mxu0 0.0
          %846 = vmatprep.subr.mxu0 0.0
          %847 = vmatpush1.msra.mxu0 0.0
          %848 = vmatprep.mubr.f32.mxu0 0.0
          %849 = vmatmul.mubr.f32.gmra.mrb[0].mxu0 %v782
          %v850 = vpop.f32.mrb[0].mxu0
          %v851 = vadd.f32 %v780, %v850
          %v852 = vpop.f32.mrb[0].mxu0
          %853 = vdwg.mxu0
          %v854 = vsub.f32 %v768, %v851
          %v855 = vmul.f32 %v854, 0.2
          %v856 = vadd.f32 %v768, %v855
          %v857 = vsub.f32 %v851, %v768
          %v858 = vmul.f32 %v857, 16.0
          %v859 = vsub.f32 %v851, %v856
          %v860 = vmul.f32 %v858, %v859
          %v861 = vsub.f32 %v769, %v860
          %v862 = vmul.f32 %v861, 0.012658228
          %v863 = vmax.f32 %v862, 0.0
          %v864 = vrsqrt.pop %v863
          %v865 = vmul.f32 %v863, %v864
          %vm866 = vcmp.eq.f32.partialorder %v863, inf
          %v867 = vsel %vm866, %v863, %v865
          %vm868 = vcmp.eq.f32.partialorder %v863, 0.0
          %v869 = vand.u32 %v863, 2147483648
          %v870 = vsel %vm868, %v869, %v867
          %v871 = vadd.f32 %v870, 1e-10
          %v872 = vrcp.pop %v871
          %v873 = vmul.f32 1.0, %v872
          %v874 = vld [vmem:[#allocation4] sm:$0xff]
          %v875 = vld [vmem:[#allocation4 + $0x8] sm:$0xff]
          %v876 = vld [vmem:[#allocation4 + $0x10] sm:$0xff]
          %v877 = vld [vmem:[#allocation4 + $0x18] sm:$0xff]
          %882 = vrot.lane.b32.xlu0 %v874, 64
          %v883 = vpop.permute.xlu0 %882
          %884 = vrot.lane.b32.xlu0 %v875, 64
          %v885 = vpop.permute.xlu0 %884
          %886 = vrot.lane.b32.xlu0 %v876, 64
          %v887 = vpop.permute.xlu0 %886
          %888 = vrot.lane.b32.xlu0 %v877, 64
          %v889 = vpop.permute.xlu0 %888
          %v894 = vadd.f32 %v874, %v883
          %v895 = vadd.f32 %v875, %v885
          %v896 = vadd.f32 %v876, %v887
          %v897 = vadd.f32 %v877, %v889
          %898 = vset.pattern.permute.xlu0 32
          %899 = vperm.xlu0 %898, %v874
          %v900 = vpop.permute.xlu0 %899
          %902 = vset.pattern.permute.xlu0 32
          %903 = vperm.xlu0 %902, %v875
          %v904 = vpop.permute.xlu0 %903
          %906 = vset.pattern.permute.xlu0 32
          %907 = vperm.xlu0 %906, %v876
          %v908 = vpop.permute.xlu0 %907
          %910 = vset.pattern.permute.xlu0 32
          %911 = vperm.xlu0 %910, %v877
          %v912 = vpop.permute.xlu0 %911
          %v915 = vlaneseq
          %v916 = vshrl.u32 %v915, 7
          %v917 = vsub.s32 0, %v916
          %v918 = vrot.slane %v856, %v917
          %v920 = vmul.f32 %v900, %v918
          %v921 = vmul.f32 %v904, %v918
          %v922 = vmul.f32 %v908, %v918
          %v923 = vmul.f32 %v912, %v918
          %v924 = vsub.f32 %v894, %v920
          %v925 = vsub.f32 %v895, %v921
          %v926 = vsub.f32 %v896, %v922
          %v927 = vsub.f32 %v897, %v923
          %v929 = vlaneseq
          %v930 = vshrl.u32 %v929, 7
          %v931 = vsub.s32 0, %v930
          %v932 = vrot.slane %v873, %v931
          %v934 = vmul.f32 %v924, %v932
          %v935 = vmul.f32 %v925, %v932
          %v936 = vmul.f32 %v926, %v932
          %v937 = vmul.f32 %v927, %v932
          %v938 = vld [vmem:[%s1 + $0x98] sm:$0xff]
          %v939 = vld [vmem:[%s1 + $0xa0] sm:$0xff]
          %v940 = vld [vmem:[%s1 + $0xa8] sm:$0xff]
          %v941 = vld [vmem:[%s1 + $0xb0] sm:$0xff]
          %v942 = vld [vmem:[%s1 + $0xb8] sm:$0x1]
          %v943 = vlaneseq
          %v944 = vshrl.u32 %v943, 7
          %v945 = vsub.s32 0, %v944
          %v946 = vrot.slane %v942, %v945
          %v948 = vsel %vm396, %v934, 0
          %v951 = vsel %vm396, %v935, 0
          %v954 = vsel %vm396, %v936, 0
          %v957 = vsel %vm396, %v937, 0
          %959 = vmatprep.subr.mxu0 0.0
          %960 = vmatpush1.msra.mxu0 %v938
          %961 = vmatprep.subr.mxu0 0.0
          %962 = vmatpush1.msra.mxu0 %v939
          %963 = vmatprep.subr.mxu0 0.0
          %964 = vmatpush1.msra.mxu0 %v940
          %965 = vmatprep.subr.mxu0 0.0
          %966 = vmatpush1.msra.mxu0 %v941
          %967 = vmatprep.subr.mxu0 0.0
          %968 = vmatpush1.msra.mxu0 0.0
          %969 = vmatprep.subr.mxu0 0.0
          %970 = vmatpush1.msra.mxu0 0.0
          %971 = vmatprep.subr.mxu0 0.0
          %972 = vmatpush1.msra.mxu0 0.0
          %973 = vmatprep.subr.mxu0 0.0
          %974 = vmatpush1.msra.mxu0 0.0
          %975 = vmatprep.subr.mxu0 0.0
          %976 = vmatpush1.msra.mxu0 0.0
          %977 = vmatprep.subr.mxu0 0.0
          %978 = vmatpush1.msra.mxu0 0.0
          %979 = vmatprep.subr.mxu0 0.0
          %980 = vmatpush1.msra.mxu0 0.0
          %981 = vmatprep.subr.mxu0 0.0
          %982 = vmatpush1.msra.mxu0 0.0
          %983 = vmatprep.subr.mxu0 0.0
          %984 = vmatpush1.msra.mxu0 0.0
          %985 = vmatprep.subr.mxu0 0.0
          %986 = vmatpush1.msra.mxu0 0.0
          %987 = vmatprep.subr.mxu0 0.0
          %988 = vmatpush1.msra.mxu0 0.0
          %989 = vmatprep.subr.mxu0 0.0
          %990 = vmatpush1.msra.mxu0 0.0
          %991 = vmatprep.subr.mxu0 0.0
          %992 = vmatpush1.msra.mxu0 0.0
          %993 = vmatprep.subr.mxu0 0.0
          %994 = vmatpush1.msra.mxu0 0.0
          %995 = vmatprep.subr.mxu0 0.0
          %996 = vmatpush1.msra.mxu0 0.0
          %997 = vmatprep.subr.mxu0 0.0
          %998 = vmatpush1.msra.mxu0 0.0
          %999 = vmatprep.subr.mxu0 0.0
          %1000 = vmatpush1.msra.mxu0 0.0
          %1001 = vmatprep.subr.mxu0 0.0
          %1002 = vmatpush1.msra.mxu0 0.0
          %1003 = vmatprep.subr.mxu0 0.0
          %1004 = vmatpush1.msra.mxu0 0.0
          %1005 = vmatprep.subr.mxu0 0.0
          %1006 = vmatpush1.msra.mxu0 0.0
          %1007 = vmatprep.subr.mxu0 0.0
          %1008 = vmatpush1.msra.mxu0 0.0
          %1009 = vmatprep.subr.mxu0 0.0
          %1010 = vmatpush1.msra.mxu0 0.0
          %1011 = vmatprep.subr.mxu0 0.0
          %1012 = vmatpush1.msra.mxu0 0.0
          %1013 = vmatprep.subr.mxu0 0.0
          %1014 = vmatpush1.msra.mxu0 0.0
          %1015 = vmatprep.subr.mxu0 0.0
          %1016 = vmatpush1.msra.mxu0 0.0
          %1017 = vmatprep.subr.mxu0 0.0
          %1018 = vmatpush1.msra.mxu0 0.0
          %1019 = vmatprep.subr.mxu0 0.0
          %1020 = vmatpush1.msra.mxu0 0.0
          %1021 = vmatprep.subr.mxu0 0.0
          %1022 = vmatpush1.msra.mxu0 0.0
          %1023 = vmatprep.mubr.f32.mxu0 0.0
          %1024 = vmatmul.mubr.f32.gmra.mrb[0].mxu0 %v948
          %v1025 = vpop.f32.mrb[0].mxu0
          %v1026 = vadd.f32 %v946, %v1025
          %v1027 = vpop.f32.mrb[0].mxu0
          %1028 = vmatprep.mubr.f32.mxu0 0.0
          %1029 = vmatmul.mubr.f32.gmra.mrb[0].mxu0 %v951
          %v1030 = vpop.f32.mrb[0].mxu0
          %v1031 = vadd.f32 %v946, %v1030
          %v1032 = vpop.f32.mrb[0].mxu0
          %1033 = vmatprep.mubr.f32.mxu0 0.0
          %1034 = vmatmul.mubr.f32.gmra.mrb[0].mxu0 %v954
          %v1035 = vpop.f32.mrb[0].mxu0
          %v1036 = vadd.f32 %v946, %v1035
          %v1037 = vpop.f32.mrb[0].mxu0
          %1038 = vmatprep.mubr.f32.mxu0 0.0
          %1039 = vmatmul.mubr.f32.gmra.mrb[0].mxu0 %v957
          %v1040 = vpop.f32.mrb[0].mxu0
          %v1041 = vadd.f32 %v946, %v1040
          %v1042 = vpop.f32.mrb[0].mxu0
          %1043 = vdwg.mxu0
          %v1044 = vmax.f32 %v1026, 0.0
          %v1045 = vmax.f32 %v1031, 0.0
          %v1046 = vmax.f32 %v1036, 0.0
          %v1047 = vmax.f32 %v1041, 0.0
          %v1048 = vld [vmem:[%s1 + $0xc0] sm:$0xff]
          %v1049 = vld [vmem:[%s1 + $0xc8] sm:$0xff]
          %v1050 = vld [vmem:[%s1 + $0xd0] sm:$0xff]
          %v1051 = vld [vmem:[%s1 + $0xd8] sm:$0xff]
          %v1052 = vld [vmem:[%s1 + $0xe0] sm:$0x1]
          %v1053 = vlaneseq
          %v1054 = vshrl.u32 %v1053, 7
          %v1055 = vsub.s32 0, %v1054
          %v1056 = vrot.slane %v1052, %v1055
          %v1058 = vsel %vm396, %v1044, 0
          %v1061 = vsel %vm396, %v1045, 0
          %v1064 = vsel %vm396, %v1046, 0
          %v1067 = vsel %vm396, %v1047, 0
          %1069 = vmatprep.subr.mxu0 0.0
          %1070 = vmatpush1.msra.mxu0 %v1048
          %1071 = vmatprep.subr.mxu0 0.0
          %1072 = vmatpush1.msra.mxu0 %v1049
          %1073 = vmatprep.subr.mxu0 0.0
          %1074 = vmatpush1.msra.mxu0 %v1050
          %1075 = vmatprep.subr.mxu0 0.0
          %1076 = vmatpush1.msra.mxu0 %v1051
          %1077 = vmatprep.subr.mxu0 0.0
          %1078 = vmatpush1.msra.mxu0 0.0
          %1079 = vmatprep.subr.mxu0 0.0
          %1080 = vmatpush1.msra.mxu0 0.0
          %1081 = vmatprep.subr.mxu0 0.0
          %1082 = vmatpush1.msra.mxu0 0.0
          %1083 = vmatprep.subr.mxu0 0.0
          %1084 = vmatpush1.msra.mxu0 0.0
          %1085 = vmatprep.subr.mxu0 0.0
          %1086 = vmatpush1.msra.mxu0 0.0
          %1087 = vmatprep.subr.mxu0 0.0
          %1088 = vmatpush1.msra.mxu0 0.0
          %1089 = vmatprep.subr.mxu0 0.0
          %1090 = vmatpush1.msra.mxu0 0.0
          %1091 = vmatprep.subr.mxu0 0.0
          %1092 = vmatpush1.msra.mxu0 0.0
          %1093 = vmatprep.subr.mxu0 0.0
          %1094 = vmatpush1.msra.mxu0 0.0
          %1095 = vmatprep.subr.mxu0 0.0
          %1096 = vmatpush1.msra.mxu0 0.0
          %1097 = vmatprep.subr.mxu0 0.0
          %1098 = vmatpush1.msra.mxu0 0.0
          %1099 = vmatprep.subr.mxu0 0.0
          %1100 = vmatpush1.msra.mxu0 0.0
          %1101 = vmatprep.subr.mxu0 0.0
          %1102 = vmatpush1.msra.mxu0 0.0
          %1103 = vmatprep.subr.mxu0 0.0
          %1104 = vmatpush1.msra.mxu0 0.0
          %1105 = vmatprep.subr.mxu0 0.0
          %1106 = vmatpush1.msra.mxu0 0.0
          %1107 = vmatprep.subr.mxu0 0.0
          %1108 = vmatpush1.msra.mxu0 0.0
          %1109 = vmatprep.subr.mxu0 0.0
          %1110 = vmatpush1.msra.mxu0 0.0
          %1111 = vmatprep.subr.mxu0 0.0
          %1112 = vmatpush1.msra.mxu0 0.0
          %1113 = vmatprep.subr.mxu0 0.0
          %1114 = vmatpush1.msra.mxu0 0.0
          %1115 = vmatprep.subr.mxu0 0.0
          %1116 = vmatpush1.msra.mxu0 0.0
          %1117 = vmatprep.subr.mxu0 0.0
          %1118 = vmatpush1.msra.mxu0 0.0
          %1119 = vmatprep.subr.mxu0 0.0
          %1120 = vmatpush1.msra.mxu0 0.0
          %1121 = vmatprep.subr.mxu0 0.0
          %1122 = vmatpush1.msra.mxu0 0.0
          %1123 = vmatprep.subr.mxu0 0.0
          %1124 = vmatpush1.msra.mxu0 0.0
          %1125 = vmatprep.subr.mxu0 0.0
          %1126 = vmatpush1.msra.mxu0 0.0
          %1127 = vmatprep.subr.mxu0 0.0
          %1128 = vmatpush1.msra.mxu0 0.0
          %1129 = vmatprep.subr.mxu0 0.0
          %1130 = vmatpush1.msra.mxu0 0.0
          %1131 = vmatprep.subr.mxu0 0.0
          %1132 = vmatpush1.msra.mxu0 0.0
          %1133 = vmatprep.mubr.f32.mxu0 0.0
          %1134 = vmatmul.mubr.f32.gmra.mrb[0].mxu0 %v1058
          %v1135 = vpop.f32.mrb[0].mxu0
          %v1136 = vadd.f32 %v1056, %v1135
          %v1137 = vpop.f32.mrb[0].mxu0
          %1138 = vmatprep.mubr.f32.mxu0 0.0
          %1139 = vmatmul.mubr.f32.gmra.mrb[0].mxu0 %v1061
          %v1140 = vpop.f32.mrb[0].mxu0
          %v1141 = vadd.f32 %v1056, %v1140
          %v1142 = vpop.f32.mrb[0].mxu0
          %1143 = vmatprep.mubr.f32.mxu0 0.0
          %1144 = vmatmul.mubr.f32.gmra.mrb[0].mxu0 %v1064
          %v1145 = vpop.f32.mrb[0].mxu0
          %v1146 = vadd.f32 %v1056, %v1145
          %v1147 = vpop.f32.mrb[0].mxu0
          %1148 = vmatprep.mubr.f32.mxu0 0.0
          %1149 = vmatmul.mubr.f32.gmra.mrb[0].mxu0 %v1067
          %v1150 = vpop.f32.mrb[0].mxu0
          %v1151 = vadd.f32 %v1056, %v1150
          %v1152 = vpop.f32.mrb[0].mxu0
          %1153 = vdwg.mxu0
          %v1154 = vld [vmem:[#allocation2] sm:$0xff]
          %v1155 = vld [vmem:[#allocation2 + $0x8] sm:$0xff]
          %v1156 = vld [vmem:[#allocation2 + $0x10] sm:$0xff]
          %v1157 = vld [vmem:[#allocation2 + $0x18] sm:$0xff]
          %v1158 = vmul.f32 %v1154, 0.1
          %v1159 = vmul.f32 %v1155, 0.1
          %v1160 = vmul.f32 %v1156, 0.1
          %v1161 = vmul.f32 %v1157, 0.1
          %v1162 = vadd.f32 %v1136, %v1158
          %v1163 = vadd.f32 %v1141, %v1159
          %v1164 = vadd.f32 %v1146, %v1160
          %v1165 = vadd.f32 %v1151, %v1161
          %v1166 = vsel %vm396, %v1162, 0.0
          %1167 = vadd.xlane.f32.xlu0 %v1166
          %v1168 = vpop.xlane.xlu0 %1167
          %v1169 = vsel %vm396, %v1163, 0.0
          %1170 = vadd.xlane.f32.xlu0 %v1169
          %v1171 = vpop.xlane.xlu0 %1170
          %v1172 = vsel %vm396, %v1164, 0.0
          %1173 = vadd.xlane.f32.xlu0 %v1172
          %v1174 = vpop.xlane.xlu0 %1173
          %v1175 = vsel %vm396, %v1165, 0.0
          %1176 = vadd.xlane.f32.xlu0 %v1175
          %v1177 = vpop.xlane.xlu0 %1176
          %v1178 = vrcp.pop 32.0
          %v1179 = vmul.f32 %v1168, %v1178
          %v1180 = vmul.f32 %v1171, %v1178
          %v1181 = vmul.f32 %v1174, %v1178
          %v1182 = vmul.f32 %v1177, %v1178
          %v1183 = vsub.f32 %v1162, %v1179
          %v1184 = vsub.f32 %v1163, %v1180
          %v1185 = vsub.f32 %v1164, %v1181
          %v1186 = vsub.f32 %v1165, %v1182
          %v1187 = vmul.f32 %v1183, %v1183
          %v1188 = vmul.f32 %v1184, %v1184
          %v1189 = vmul.f32 %v1185, %v1185
          %v1190 = vmul.f32 %v1186, %v1186
          %v1191 = vsel %vm396, %v1187, 0.0
          %1192 = vadd.xlane.f32.xlu0 %v1191
          %v1193 = vpop.xlane.xlu0 %1192
          %v1194 = vsel %vm396, %v1188, 0.0
          %1195 = vadd.xlane.f32.xlu0 %v1194
          %v1196 = vpop.xlane.xlu0 %1195
          %v1197 = vsel %vm396, %v1189, 0.0
          %1198 = vadd.xlane.f32.xlu0 %v1197
          %v1199 = vpop.xlane.xlu0 %1198
          %v1200 = vsel %vm396, %v1190, 0.0
          %1201 = vadd.xlane.f32.xlu0 %v1200
          %v1202 = vpop.xlane.xlu0 %1201
          %v1203 = vmul.f32 %v1193, %v1178
          %v1204 = vmul.f32 %v1196, %v1178
          %v1205 = vmul.f32 %v1199, %v1178
          %v1206 = vmul.f32 %v1202, %v1178
          %v1207 = vadd.f32 %v1203, 1e-05
          %v1208 = vadd.f32 %v1204, 1e-05
          %v1209 = vadd.f32 %v1205, 1e-05
          %v1210 = vadd.f32 %v1206, 1e-05
          %v1211 = vrsqrt.pop %v1207
          %v1212 = vrsqrt.pop %v1208
          %v1213 = vrsqrt.pop %v1209
          %v1214 = vrsqrt.pop %v1210
          %v1215 = vmul.f32 %v1183, %v1211
          %v1216 = vmul.f32 %v1184, %v1212
          %v1217 = vmul.f32 %v1185, %v1213
          %v1218 = vmul.f32 %v1186, %v1214
          %v1219 = vld [vmem:[%s1 + $0xe8] sm:$0x1]
          %v1220 = vlaneseq
          %v1221 = vshrl.u32 %v1220, 7
          %v1222 = vsub.s32 0, %v1221
          %v1223 = vrot.slane %v1219, %v1222
          %v1224 = vmul.f32 %v1215, %v1223
          %v1225 = vmul.f32 %v1216, %v1223
          %v1226 = vmul.f32 %v1217, %v1223
          %v1227 = vmul.f32 %v1218, %v1223
          %v1228 = vld [vmem:[%s1 + $0xf0] sm:$0x1]
          %v1229 = vlaneseq
          %v1230 = vshrl.u32 %v1229, 7
          %v1231 = vsub.s32 0, %v1230
          %v1232 = vrot.slane %v1228, %v1231
          %v1233 = vadd.f32 %v1224, %v1232
          %v1234 = vadd.f32 %v1225, %v1232
          %v1235 = vadd.f32 %v1226, %v1232
          %v1236 = vadd.f32 %v1227, %v1232
          %1237 = vst.msk [vmem:[#allocation2] sm:$0xff] %vm396, %v1233
          %1238 = vst.msk [vmem:[#allocation2 + $0x8] sm:$0xff] %vm396, %v1234
          %1239 = vst.msk [vmem:[#allocation2 + $0x10] sm:$0xff] %vm396, %v1235
          %1240 = vst.msk [vmem:[#allocation2 + $0x18] sm:$0xff] %vm396, %v1236
        $region40: #{tpu_custom_call.1} parent=27 // pred_fallthru
          _
        %p1241 = scmp.eq.s32.totalorder %s18, 1
        %p1242 = pnand %p1241, %p764
        %p1243 = pneg %p1242
        // Predicated region
        $region41: #{tpu_custom_call.1} parent=27 // pred_check
          _
        $region42: #{tpu_custom_call.1} parent=27 // pred_check_branch
          %1245 = sbr.rel (%p1242) target = $region44
        $region43: #{tpu_custom_call.1} parent=27 // pred_region
          %v1246 = vld [vmem:[#allocation2] sm:$0xff]
          %v1247 = vld [vmem:[#allocation2 + $0x8] sm:$0xff]
          %v1248 = vld [vmem:[#allocation2 + $0x10] sm:$0xff]
          %v1249 = vld [vmem:[#allocation2 + $0x18] sm:$0xff]
          %v1250 = vld [vmem:[%s1 + $0xf8] sm:$0xff]
          %v1251 = vld [vmem:[%s1 + $0x100] sm:$0xff]
          %v1252 = vld [vmem:[%s1 + $0x108] sm:$0xff]
          %v1253 = vld [vmem:[%s1 + $0x110] sm:$0xff]
          %v1254 = vld [vmem:[%s1 + $0x118] sm:$0xff]
          %v1255 = vld [vmem:[%s1 + $0x120] sm:$0xff]
          %v1256 = vld [vmem:[%s1 + $0x128] sm:$0xff]
          %v1257 = vld [vmem:[%s1 + $0x130] sm:$0xff]
          %v1259 = vsel %vm396, %v1248, 0
          %v1262 = vsel %vm396, %v1249, 0
          %1264 = vmatprep.subr.mxu0 0.0
          %1265 = vmatpush1.msra.mxu0 %v1254
          %1266 = vmatprep.subr.mxu0 0.0
          %1267 = vmatpush1.msra.mxu0 %v1255
          %1268 = vmatprep.subr.mxu0 0.0
          %1269 = vmatpush1.msra.mxu0 %v1256
          %1270 = vmatprep.subr.mxu0 0.0
          %1271 = vmatpush1.msra.mxu0 %v1257
          %1272 = vmatprep.subr.mxu0 0.0
          %1273 = vmatpush1.msra.mxu0 0.0
          %1274 = vmatprep.subr.mxu0 0.0
          %1275 = vmatpush1.msra.mxu0 0.0
          %1276 = vmatprep.subr.mxu0 0.0
          %1277 = vmatpush1.msra.mxu0 0.0
          %1278 = vmatprep.subr.mxu0 0.0
          %1279 = vmatpush1.msra.mxu0 0.0
          %1280 = vmatprep.subr.mxu0 0.0
          %1281 = vmatpush1.msra.mxu0 0.0
          %1282 = vmatprep.subr.mxu0 0.0
          %1283 = vmatpush1.msra.mxu0 0.0
          %1284 = vmatprep.subr.mxu0 0.0
          %1285 = vmatpush1.msra.mxu0 0.0
          %1286 = vmatprep.subr.mxu0 0.0
          %1287 = vmatpush1.msra.mxu0 0.0
          %1288 = vmatprep.subr.mxu0 0.0
          %1289 = vmatpush1.msra.mxu0 0.0
          %1290 = vmatprep.subr.mxu0 0.0
          %1291 = vmatpush1.msra.mxu0 0.0
          %1292 = vmatprep.subr.mxu0 0.0
          %1293 = vmatpush1.msra.mxu0 0.0
          %1294 = vmatprep.subr.mxu0 0.0
          %1295 = vmatpush1.msra.mxu0 0.0
          %1296 = vmatprep.subr.mxu0 0.0
          %1297 = vmatpush1.msra.mxu0 0.0
          %1298 = vmatprep.subr.mxu0 0.0
          %1299 = vmatpush1.msra.mxu0 0.0
          %1300 = vmatprep.subr.mxu0 0.0
          %1301 = vmatpush1.msra.mxu0 0.0
          %1302 = vmatprep.subr.mxu0 0.0
          %1303 = vmatpush1.msra.mxu0 0.0
          %1304 = vmatprep.subr.mxu0 0.0
          %1305 = vmatpush1.msra.mxu0 0.0
          %1306 = vmatprep.subr.mxu0 0.0
          %1307 = vmatpush1.msra.mxu0 0.0
          %1308 = vmatprep.subr.mxu0 0.0
          %1309 = vmatpush1.msra.mxu0 0.0
          %1310 = vmatprep.subr.mxu0 0.0
          %1311 = vmatpush1.msra.mxu0 0.0
          %1312 = vmatprep.subr.mxu0 0.0
          %1313 = vmatpush1.msra.mxu0 0.0
          %1314 = vmatprep.subr.mxu0 0.0
          %1315 = vmatpush1.msra.mxu0 0.0
          %1316 = vmatprep.subr.mxu0 0.0
          %1317 = vmatpush1.msra.mxu0 0.0
          %1318 = vmatprep.subr.mxu0 0.0
          %1319 = vmatpush1.msra.mxu0 0.0
          %1320 = vmatprep.subr.mxu0 0.0
          %1321 = vmatpush1.msra.mxu0 0.0
          %1322 = vmatprep.subr.mxu0 0.0
          %1323 = vmatpush1.msra.mxu0 0.0
          %1324 = vmatprep.subr.mxu0 0.0
          %1325 = vmatpush1.msra.mxu0 0.0
          %1326 = vmatprep.subr.mxu0 0.0
          %1327 = vmatpush1.msra.mxu0 0.0
          %1328 = vmatprep.mubr.f32.mxu0 0.0
          %1329 = vmatmul.mubr.f32.gmra.mrb[0].mxu0 %v1259
          %v1330 = vpop.f32.mrb[0].mxu0
          %v1331 = vadd.f32 0.0, %v1330
          %v1332 = vpop.f32.mrb[0].mxu0
          %1333 = vmatprep.mubr.f32.mxu0 0.0
          %1334 = vmatmul.mubr.f32.gmra.mrb[0].mxu0 %v1262
          %v1335 = vpop.f32.mrb[0].mxu0
          %v1336 = vadd.f32 0.0, %v1335
          %v1337 = vpop.f32.mrb[0].mxu0
          %1338 = vdwg.mxu0
          %v1340 = vsel %vm396, %v1246, 0
          %v1343 = vsel %vm396, %v1247, 0
          %1345 = vmatprep.subr.mxu0 0.0
          %1346 = vmatpush1.msra.mxu0 %v1250
          %1347 = vmatprep.subr.mxu0 0.0
          %1348 = vmatpush1.msra.mxu0 %v1251
          %1349 = vmatprep.subr.mxu0 0.0
          %1350 = vmatpush1.msra.mxu0 %v1252
          %1351 = vmatprep.subr.mxu0 0.0
          %1352 = vmatpush1.msra.mxu0 %v1253
          %1353 = vmatprep.subr.mxu0 0.0
          %1354 = vmatpush1.msra.mxu0 0.0
          %1355 = vmatprep.subr.mxu0 0.0
          %1356 = vmatpush1.msra.mxu0 0.0
          %1357 = vmatprep.subr.mxu0 0.0
          %1358 = vmatpush1.msra.mxu0 0.0
          %1359 = vmatprep.subr.mxu0 0.0
          %1360 = vmatpush1.msra.mxu0 0.0
          %1361 = vmatprep.subr.mxu0 0.0
          %1362 = vmatpush1.msra.mxu0 0.0
          %1363 = vmatprep.subr.mxu0 0.0
          %1364 = vmatpush1.msra.mxu0 0.0
          %1365 = vmatprep.subr.mxu0 0.0
          %1366 = vmatpush1.msra.mxu0 0.0
          %1367 = vmatprep.subr.mxu0 0.0
          %1368 = vmatpush1.msra.mxu0 0.0
          %1369 = vmatprep.subr.mxu0 0.0
          %1370 = vmatpush1.msra.mxu0 0.0
          %1371 = vmatprep.subr.mxu0 0.0
          %1372 = vmatpush1.msra.mxu0 0.0
          %1373 = vmatprep.subr.mxu0 0.0
          %1374 = vmatpush1.msra.mxu0 0.0
          %1375 = vmatprep.subr.mxu0 0.0
          %1376 = vmatpush1.msra.mxu0 0.0
          %1377 = vmatprep.subr.mxu0 0.0
          %1378 = vmatpush1.msra.mxu0 0.0
          %1379 = vmatprep.subr.mxu0 0.0
          %1380 = vmatpush1.msra.mxu0 0.0
          %1381 = vmatprep.subr.mxu0 0.0
          %1382 = vmatpush1.msra.mxu0 0.0
          %1383 = vmatprep.subr.mxu0 0.0
          %1384 = vmatpush1.msra.mxu0 0.0
          %1385 = vmatprep.subr.mxu0 0.0
          %1386 = vmatpush1.msra.mxu0 0.0
          %1387 = vmatprep.subr.mxu0 0.0
          %1388 = vmatpush1.msra.mxu0 0.0
          %1389 = vmatprep.subr.mxu0 0.0
          %1390 = vmatpush1.msra.mxu0 0.0
          %1391 = vmatprep.subr.mxu0 0.0
          %1392 = vmatpush1.msra.mxu0 0.0
          %1393 = vmatprep.subr.mxu0 0.0
          %1394 = vmatpush1.msra.mxu0 0.0
          %1395 = vmatprep.subr.mxu0 0.0
          %1396 = vmatpush1.msra.mxu0 0.0
          %1397 = vmatprep.subr.mxu0 0.0
          %1398 = vmatpush1.msra.mxu0 0.0
          %1399 = vmatprep.subr.mxu0 0.0
          %1400 = vmatpush1.msra.mxu0 0.0
          %1401 = vmatprep.subr.mxu0 0.0
          %1402 = vmatpush1.msra.mxu0 0.0
          %1403 = vmatprep.subr.mxu0 0.0
          %1404 = vmatpush1.msra.mxu0 0.0
          %1405 = vmatprep.subr.mxu0 0.0
          %1406 = vmatpush1.msra.mxu0 0.0
          %1407 = vmatprep.subr.mxu0 0.0
          %1408 = vmatpush1.msra.mxu0 0.0
          %1409 = vmatprep.mubr.f32.mxu0 0.0
          %1410 = vmatmul.mubr.f32.gmra.mrb[0].mxu0 %v1340
          %v1411 = vpop.f32.mrb[0].mxu0
          %v1412 = vadd.f32 %v1331, %v1411
          %v1413 = vpop.f32.mrb[0].mxu0
          %1414 = vmatprep.mubr.f32.mxu0 0.0
          %1415 = vmatmul.mubr.f32.gmra.mrb[0].mxu0 %v1343
          %v1416 = vpop.f32.mrb[0].mxu0
          %v1417 = vadd.f32 %v1336, %v1416
          %v1418 = vpop.f32.mrb[0].mxu0
          %1419 = vdwg.mxu0
          %v1420 = vld [vmem:[%s1 + $0x138] sm:$0x1]
          %v1421 = vlaneseq
          %v1422 = vshrl.u32 %v1421, 7
          %v1423 = vsub.s32 0, %v1422
          %v1424 = vrot.slane %v1420, %v1423
          %v1425 = vadd.f32 %v1412, %v1424
          %v1426 = vadd.f32 %v1417, %v1424
          %v1427 = vmax.f32 %v1425, 0.0
          %v1428 = vmax.f32 %v1426, 0.0
          %v1429 = vld [vmem:[%s1 + $0x140] sm:$0x1]
          %v1430 = vld [vmem:[%s1 + $0x148] sm:$0x1]
          %1432 = vset.pattern.permute.xlu0 0
          %1433 = vperm.xlu0 %1432, %v1430
          %v1434 = vpop.permute.xlu0 %1433
          %v1437 = vsel %vm498, %v1429, 0
          %v1440 = vsel %vm498, %v1427, 0
          %v1443 = vsel %vm498, %v1428, 0
          %1445 = vmatprep.subr.mxu0 0.0
          %1446 = vmatpush1.xpose.msra.mxu0 %v1440
          %1447 = vmatprep.subr.mxu0 0.0
          %1448 = vmatpush1.xpose.msra.mxu0 %v1443
          %1449 = vmatprep.subr.mxu0 0.0
          %1450 = vmatpush1.xpose.msra.mxu0 0.0
          %1451 = vmatprep.subr.mxu0 0.0
          %1452 = vmatpush1.xpose.msra.mxu0 0.0
          %1453 = vmatprep.subr.mxu0 0.0
          %1454 = vmatpush1.xpose.msra.mxu0 0.0
          %1455 = vmatprep.subr.mxu0 0.0
          %1456 = vmatpush1.xpose.msra.mxu0 0.0
          %1457 = vmatprep.subr.mxu0 0.0
          %1458 = vmatpush1.xpose.msra.mxu0 0.0
          %1459 = vmatprep.subr.mxu0 0.0
          %1460 = vmatpush1.xpose.msra.mxu0 0.0
          %1461 = vmatprep.subr.mxu0 0.0
          %1462 = vmatpush1.xpose.msra.mxu0 0.0
          %1463 = vmatprep.subr.mxu0 0.0
          %1464 = vmatpush1.xpose.msra.mxu0 0.0
          %1465 = vmatprep.subr.mxu0 0.0
          %1466 = vmatpush1.xpose.msra.mxu0 0.0
          %1467 = vmatprep.subr.mxu0 0.0
          %1468 = vmatpush1.xpose.msra.mxu0 0.0
          %1469 = vmatprep.subr.mxu0 0.0
          %1470 = vmatpush1.xpose.msra.mxu0 0.0
          %1471 = vmatprep.subr.mxu0 0.0
          %1472 = vmatpush1.xpose.msra.mxu0 0.0
          %1473 = vmatprep.subr.mxu0 0.0
          %1474 = vmatpush1.xpose.msra.mxu0 0.0
          %1475 = vmatprep.subr.mxu0 0.0
          %1476 = vmatpush1.xpose.msra.mxu0 0.0
          %1477 = vmatprep.subr.mxu0 0.0
          %1478 = vmatpush1.xpose.msra.mxu0 0.0
          %1479 = vmatprep.subr.mxu0 0.0
          %1480 = vmatpush1.xpose.msra.mxu0 0.0
          %1481 = vmatprep.subr.mxu0 0.0
          %1482 = vmatpush1.xpose.msra.mxu0 0.0
          %1483 = vmatprep.subr.mxu0 0.0
          %1484 = vmatpush1.xpose.msra.mxu0 0.0
          %1485 = vmatprep.subr.mxu0 0.0
          %1486 = vmatpush1.xpose.msra.mxu0 0.0
          %1487 = vmatprep.subr.mxu0 0.0
          %1488 = vmatpush1.xpose.msra.mxu0 0.0
          %1489 = vmatprep.subr.mxu0 0.0
          %1490 = vmatpush1.xpose.msra.mxu0 0.0
          %1491 = vmatprep.subr.mxu0 0.0
          %1492 = vmatpush1.xpose.msra.mxu0 0.0
          %1493 = vmatprep.subr.mxu0 0.0
          %1494 = vmatpush1.xpose.msra.mxu0 0.0
          %1495 = vmatprep.subr.mxu0 0.0
          %1496 = vmatpush1.xpose.msra.mxu0 0.0
          %1497 = vmatprep.subr.mxu0 0.0
          %1498 = vmatpush1.xpose.msra.mxu0 0.0
          %1499 = vmatprep.subr.mxu0 0.0
          %1500 = vmatpush1.xpose.msra.mxu0 0.0
          %1501 = vmatprep.subr.mxu0 0.0
          %1502 = vmatpush1.xpose.msra.mxu0 0.0
          %1503 = vmatprep.subr.mxu0 0.0
          %1504 = vmatpush1.xpose.msra.mxu0 0.0
          %1505 = vmatprep.subr.mxu0 0.0
          %1506 = vmatpush1.xpose.msra.mxu0 0.0
          %1507 = vmatprep.subr.mxu0 0.0
          %1508 = vmatpush1.xpose.msra.mxu0 0.0
          %1509 = vmatprep.mubr.f32.mxu0 0.0
          %1510 = vmatmul.mubr.f32.gmra.mrb[0].mxu0 %v1437
          %v1511 = vpop.f32.mrb[0].mxu0
          %v1512 = vadd.f32 %v1434, %v1511
          %v1513 = vpop.f32.mrb[0].mxu0
          %1514 = vdwg.mxu0
          %vm1515 = vcmask 122880
          %1516 = vst.msk [vmem:[#allocation7] sm:$0x1] %vm1515, %v1512
        $region44: #{tpu_custom_call.1} parent=27 // pred_fallthru
          _
        // Predicated region
        $region45: #{tpu_custom_call.1} parent=27 // pred_check
          %p1517 = pneg %p86
        $region46: #{tpu_custom_call.1} parent=27 // pred_check_branch
          %1519 = sbr.rel (%p1517) target = $region48
        $region47: #{tpu_custom_call.1} parent=27 // pred_region
          %s1521 = ssub.s32 16, 16
          %1522 = vsyncadd [#allocation8], %s1521
          %s1524 = sshll.u32 [#allocation7], 4
          %s1525 = int_to_ptr.vmem [resolvable:$true] %s1524
          %1527 = dma.vmem_to_hbm [thread:$0]  %s1525, 16, %s2, [#allocation8]
        $region48: #{tpu_custom_call.1} parent=27 // pred_fallthru
          _
        // Predicated region
        $region49: #{tpu_custom_call.1} parent=27 // pred_check
          %p1528 = pneg %p86
        $region50: #{tpu_custom_call.1} parent=27 // pred_check_branch
          %1530 = sbr.rel (%p1528) target = $region52
        $region51: #{tpu_custom_call.1} parent=27 // pred_region
          %1531 = dma.done [#allocation8], 16
        $region52: #{tpu_custom_call.1} parent=27 // pred_fallthru
          _
      $region28: #{tpu_custom_call.1} parent=5 // pred_fallthru
        _
      %p1532 = scmp.le.s32.totalorder 2, %s9
      // Predicated region
      $region53: #{tpu_custom_call.1} parent=5 // pred_check
        %p1533 = pneg %p1532
      $region54: #{tpu_custom_call.1} parent=5 // pred_check_branch
        %1535 = sbr.rel (%p1533) target = $region56
      $region55: #{tpu_custom_call.1} parent=5 // pred_region
        %s1536 = ssub.s32 %s9, 2
      $region56: #{tpu_custom_call.1} parent=5 // pred_fallthru
        _
    $region6: #{tpu_custom_call.1} parent=1 // loop_footer
      %s13 = sadd.s32 1, %s9
    $region7: #{tpu_custom_call.1} parent=1 // loop_footer_branch
      %8 = sbr.rel target = $region3
    $region8: #{tpu_custom_call.1} parent=1 // loop_exit
      _
    %1537 = vsyncpa [#allocation8], 1
    %s1538 = scalar_lea.sflag [#allocation8], 1
    %1539 = vsyncpa %s1538, 1

</llo_original>
